<compile_context>
chip_gen: v5e
topology: v5e:2x2
jax: 0.10.0
libtpu: 0.0.40
codegen_flags: <defaults>
</compile_context>

<pallas_src>
import jax
import jax.numpy as jnp
import numpy as np
from jax.experimental import pallas as pl
from jax.experimental.pallas import tpu as pltpu

T = 8          # sequence length (frames)
F = 64         # num_ft (stand-in for DenseNet169 feature dim)
H = 32         # fc_ch[0] == fc_ch[1] == LSTM hidden size
NP = 19        # num_phase_labels
NT = 21        # num_tool_labels
BN_EPS = 1e-5
NEG_SLOPE = 0.2
LANES = 128

# ---- parameter-slab row layout (every section starts on a multiple of 8) ----
R_WIH0 = 0            # (F, 4H) = (64, 128)
R_WHH0 = 64           # (H, 4H) = (32, 128)
R_B0   = 96           # (1, 4H)
R_WIH1 = 104          # (H, 4H) = (32, 128)
R_WHH1 = 136          # (H, 4H) = (32, 128)
R_B1   = 168          # (1, 4H)
R_WT   = 176          # (F, H)  = (64, 32)
R_BT   = 240          # (1, H)
R_W1   = 248          # (H, 2H) = (32, 64)  packed [phase|tool] layer-1, BN folded
R_BH1  = 280          # (1, 2H)
R_W2   = 288          # (2H, 2H) block-diag: phase layer-2 | tool layer-2 (BN folded)
R_BH2  = 352          # (1, 2H)
R_W3   = 360          # (2H, 128): [0:H,0:NP]=pw3, [H:2H,NP:NP+NT]=tw3, rest 0
R_BH3  = 424          # (1, 128)
N_ROWS = 432


def _leaky(x):
    return jnp.where(x >= 0, x, NEG_SLOPE * x)


def phase_classifier_kernel(ft_ref, p_ref, out_ref, xs_ref):
    HI = jax.lax.Precision.HIGHEST
    ft = ft_ref[...]                                            # (T, F)

    # ---- hoisted batched work (off the serial critical path), exact f32 ----
    # Layer-0 input projection for all T steps in one MXU op.
    g0 = (jnp.dot(ft, p_ref[R_WIH0:R_WIH0 + F, :],
                  preferred_element_type=jnp.float32, precision=HI)
          + p_ref[R_B0:R_B0 + 1, :])                            # (T, 4H)
    # trans: project encoder features -> xs rows 0:T
    ft32 = (jnp.dot(ft, p_ref[R_WT:R_WT + F, 0:H],
                    preferred_element_type=jnp.float32, precision=HI)
            + p_ref[R_BT:R_BT + 1, 0:H])                        # (T, H)
    xs_ref[0:T, :] = ft32

    # Recurrence weights cast once to bf16 -> native single-pass MXU matmuls
    # on the serial chain (perf-review item 1).
    whh0 = p_ref[R_WHH0:R_WHH0 + H, :].astype(jnp.bfloat16)     # (H, 4H)
    wih1 = p_ref[R_WIH1:R_WIH1 + H, :].astype(jnp.bfloat16)     # (H, 4H)
    whh1 = p_ref[R_WHH1:R_WHH1 + H, :].astype(jnp.bfloat16)     # (H, 4H)
    b1 = p_ref[R_B1:R_B1 + 1, :]                                # (1, 4H)

    def cell(g, c):
        # sigmoid once on the full 128-lane gate vreg; tanh only on the
        # 32-lane g slice (+ tanh(c)) -- EUP work trimmed per review.
        sg = jax.nn.sigmoid(g)
        gg = jnp.tanh(g[:, 2 * H:3 * H])
        c = sg[:, H:2 * H] * c + sg[:, 0:H] * gg
        h = sg[:, 3 * H:4 * H] * jnp.tanh(c)
        return h, c

    # ---- both LSTM layers interleaved in one fully-unrolled time loop ----
    # Critical path ~T+1 dependent matmul links instead of 2T; all per-step
    # state stays in vregs.
    h1 = jnp.zeros((1, H), jnp.float32)
    c1 = jnp.zeros((1, H), jnp.float32)
    h2 = jnp.zeros((1, H), jnp.float32)
    c2 = jnp.zeros((1, H), jnp.float32)
    for t in range(T):                                          # static unroll
        ga = g0[t:t + 1, :] + jnp.dot(h1.astype(jnp.bfloat16), whh0,
                                      preferred_element_type=jnp.float32)
        h1, c1 = cell(ga, c1)
        gb = (jnp.dot(h1.astype(jnp.bfloat16), wih1,
                      preferred_element_type=jnp.float32)
              + jnp.dot(h2.astype(jnp.bfloat16), whh1,
                        preferred_element_type=jnp.float32)
              + b1)
        h2, c2 = cell(gb, c2)
        # Fire-and-forget row store; not read until after the loop, so it is
        # not on the recurrence dependency chain.
        xs_ref[T + t:T + t + 1, :] = h2

    # ---- fused phase/tool heads on the stacked (2T, H) input, BN folded ----
    x = xs_ref[...]                                             # (2T, H)
    z1 = _leaky(jnp.dot(x, p_ref[R_W1:R_W1 + H, 0:2 * H],
                        preferred_element_type=jnp.float32, precision=HI)
                + p_ref[R_BH1:R_BH1 + 1, 0:2 * H])
    z2 = _leaky(jnp.dot(z1, p_ref[R_W2:R_W2 + 2 * H, 0:2 * H],
                        preferred_element_type=jnp.float32, precision=HI)
                + p_ref[R_BH2:R_BH2 + 1, 0:2 * H])
    out_ref[...] = (jnp.dot(z2, p_ref[R_W3:R_W3 + 2 * H, :],
                            preferred_element_type=jnp.float32, precision=HI)
                    + p_ref[R_BH3:R_BH3 + 1, :])                # (2T, 128)


def phase_classifier_forward(ft, param_slab):
    vmem = pl.BlockSpec(memory_space=pltpu.MemorySpace.VMEM)
    out = pl.pallas_call(
        phase_classifier_kernel,
        out_shape=jax.ShapeDtypeStruct((2 * T, LANES), jnp.float32),
        in_specs=[vmem, vmem],
        out_specs=vmem,
        scratch_shapes=[pltpu.VMEM((2 * T, H), jnp.float32)],  # stacked head input
    )(ft, param_slab)
    h_t = out[0:T, 0:NP]
    h_p_t = out[T:2 * T, 0:NP]
    q_t = out[0:T, NP:NP + NT]
    q_p_t = out[T:2 * T, NP:NP + NT]
    return h_t, h_p_t, q_t, q_p_t


# --------------------------- host-side param prep ---------------------------

def _fold_bn(w, b, bn):
    # eval-mode BN folded into the preceding Linear: W'=W*s, b'=(b-mean)*s+beta
    gamma, beta, mean, var = bn[0:1], bn[1:2], bn[2:3], bn[3:4]
    s = gamma * jax.lax.rsqrt(var + BN_EPS)
    return w * s, (b - mean) * s + beta


def pack_params(p):
    pw1, pb1 = _fold_bn(p["pw1"], p["pb1"], p["pbn1"])
    tw1, tb1 = _fold_bn(p["tw1"], p["tb1"], p["tbn1"])
    tw2, tb2 = _fold_bn(p["tw2"], p["tb2"], p["tbn2"])
    pw2, pb2 = p["pw2"], p["pb2"]

    w1 = jnp.concatenate([pw1, tw1], axis=1)                         # (H, 2H)
    b1h = jnp.concatenate([pb1, tb1], axis=1)                        # (1, 2H)
    w2 = jnp.zeros((2 * H, 2 * H), jnp.float32)
    w2 = w2.at[0:H, 0:H].set(pw2).at[H:2 * H, H:2 * H].set(tw2)      # block-diag
    b2h = jnp.concatenate([pb2, tb2], axis=1)                        # (1, 2H)
    w3 = jnp.zeros((2 * H, LANES), jnp.float32)
    w3 = w3.at[0:H, 0:NP].set(p["pw3"]).at[H:2 * H, NP:NP + NT].set(p["tw3"])
    b3h = jnp.zeros((1, LANES), jnp.float32)
    b3h = b3h.at[:, 0:NP].set(p["pb3"]).at[:, NP:NP + NT].set(p["tb3"])

    slab = np.zeros((N_ROWS, LANES), np.float32)

    def put(row, arr):
        a = np.asarray(arr, np.float32)
        slab[row:row + a.shape[0], 0:a.shape[1]] = a

    put(R_WIH0, p["wih0"]); put(R_WHH0, p["whh0"]); put(R_B0, p["b0"])
    put(R_WIH1, p["wih1"]); put(R_WHH1, p["whh1"]); put(R_B1, p["b1"])
    put(R_WT, p["wt"]); put(R_BT, p["bt"])
    put(R_W1, w1); put(R_BH1, b1h)
    put(R_W2, w2); put(R_BH2, b2h)
    put(R_W3, w3); put(R_BH3, b3h)
    return jnp.asarray(slab)


def make_params(key):
    ks = jax.random.split(key, 23)

    def nrm(k, shape, scale=0.2):
        return (scale * jax.random.normal(k, shape)).astype(jnp.float32)

    def bn(k, n):
        # Non-trivial eval-mode running stats so BN folding is actually tested.
        k1, k2, k3, k4 = jax.random.split(k, 4)
        gamma = 1.0 + 0.1 * jax.random.normal(k1, (1, n))
        beta = 0.1 * jax.random.normal(k2, (1, n))
        mean = 0.1 * jax.random.normal(k3, (1, n))
        var = 0.5 + jax.random.uniform(k4, (1, n))
        return jnp.concatenate([gamma, beta, mean, var], axis=0).astype(jnp.float32)

    return dict(
        wt=nrm(ks[0], (F, H)), bt=nrm(ks[1], (1, H)),
        wih0=nrm(ks[2], (F, 4 * H)), whh0=nrm(ks[3], (H, 4 * H)), b0=nrm(ks[4], (1, 4 * H)),
        wih1=nrm(ks[5], (H, 4 * H)), whh1=nrm(ks[6], (H, 4 * H)), b1=nrm(ks[7], (1, 4 * H)),
        pw1=nrm(ks[8], (H, H)), pb1=nrm(ks[9], (1, H)), pbn1=bn(ks[10], H),
        pw2=nrm(ks[11], (H, H)), pb2=nrm(ks[12], (1, H)),
        pw3=nrm(ks[13], (H, NP)), pb3=nrm(ks[14], (1, NP)),
        tw1=nrm(ks[15], (H, H)), tb1=nrm(ks[16], (1, H)), tbn1=bn(ks[17], H),
        tw2=nrm(ks[18], (H, H)), tb2=nrm(ks[19], (1, H)), tbn2=bn(ks[20], H),
        tw3=nrm(ks[21], (H, NT)), tb3=nrm(ks[22], (1, NT)),
    )


# ------------------------------ pure-JAX reference ------------------------------

def reference_forward(ft, p):
    HI = jax.lax.Precision.HIGHEST

    def fdot(a, b):
        # Exact f32 matmul (everything except the recurrence).
        return jnp.dot(a, b, precision=HI)

    def bdot(a, b):
        # The recurrence matmuls intentionally use bf16 operands with f32
        # accumulation, matching the kernel's single-pass MXU choice
        # (perf-review item 1 / correctness note).  All other math is exact f32.
        return jnp.dot(a.astype(jnp.bfloat16), b.astype(jnp.bfloat16),
                       preferred_element_type=jnp.float32)

    def lstm_cell(x_proj, h, c, whh):
        g = x_proj + bdot(h, whh)
        i = jax.nn.sigmoid(g[:, :H])
        f = jax.nn.sigmoid(g[:, H:2 * H])
        gg = jnp.tanh(g[:, 2 * H:3 * H])
        o = jax.nn.sigmoid(g[:, 3 * H:])
        c = f * c + i * gg
        return o * jnp.tanh(c), c

    def scan_step(carry, x_t):
        h1, c1, h2, c2 = carry
        x_t = x_t[None, :]
        h1, c1 = lstm_cell(fdot(x_t, p["wih0"]) + p["b0"], h1, c1, p["whh0"])
        h2, c2 = lstm_cell(bdot(h1, p["wih1"]) + p["b1"], h2, c2, p["whh1"])
        return (h1, c1, h2, c2), h2[0]

    z = jnp.zeros((1, H), jnp.float32)
    _, rnn_out = jax.lax.scan(scan_step, (z, z, z, z), ft)

    def bn(x, b):
        return (x - b[2:3]) * b[0:1] * jax.lax.rsqrt(b[3:4] + BN_EPS) + b[1:2]

    def leaky(x):
        return jnp.where(x >= 0, x, NEG_SLOPE * x)

    ft32 = fdot(ft, p["wt"]) + p["bt"]

    def phase_head(zz):
        z1 = leaky(bn(fdot(zz, p["pw1"]) + p["pb1"], p["pbn1"]))
        z2 = leaky(fdot(z1, p["pw2"]) + p["pb2"])
        return fdot(z2, p["pw3"]) + p["pb3"]

    def tool_head(zz):
        z1 = leaky(bn(fdot(zz, p["tw1"]) + p["tb1"], p["tbn1"]))
        z2 = leaky(bn(fdot(z1, p["tw2"]) + p["tb2"], p["tbn2"]))
        return fdot(z2, p["tw3"]) + p["tb3"]

    return phase_head(ft32), phase_head(rnn_out), tool_head(ft32), tool_head(rnn_out)


if __name__ == "__main__":
    key = jax.random.PRNGKey(0)
    kx, kp = jax.random.split(key)

    # Encoder feature input (seq_len, num_ft)
    ft = jax.random.normal(kx, (T, F), dtype=jnp.float32)
    params = make_params(kp)
    slab = pack_params(params)

    outs = phase_classifier_forward(ft, slab)
    outs = jax.block_until_ready(outs)

    refs = reference_forward(ft, params)
    # 1e-3 tolerance: kernel and reference share the bf16-recurrence precision
    # choice; residual differences come from accumulation order and the
    # Mosaic-vs-XLA transcendental implementations.
    for o, r in zip(outs, refs):
        np.testing.assert_allclose(np.asarray(o), np.asarray(r), rtol=1e-3, atol=1e-3)

    print("KERNEL_OK")
</pallas_src>

<mosaic_0001>
module attributes {stable_mosaic.version = 11 : i64} {
  func.func @phase_classifier_kernel(%arg0: memref<8x64xf32, #tpu.memory_space<vmem>>, %arg1: memref<432x128xf32, #tpu.memory_space<vmem>>, %arg2: memref<16x128xf32, #tpu.memory_space<vmem>>, %arg3: memref<16x32xf32, #tpu.memory_space<vmem>>) attributes {dimension_semantics = [], scalar_prefetch = 0 : i64, scratch_operands = 1 : i64, tpu.core_type = #tpu.core_type<tc>} {
    %c0 = arith.constant 0 : index
    %c0_0 = arith.constant 0 : index
    %0 = vector.load %arg0[%c0, %c0_0] : memref<8x64xf32, #tpu.memory_space<vmem>>, vector<8x64xf32>
    %c0_1 = arith.constant 0 : index
    %c0_2 = arith.constant 0 : index
    %1 = vector.load %arg1[%c0_1, %c0_2] : memref<432x128xf32, #tpu.memory_space<vmem>>, vector<64x128xf32>
    %cst = arith.constant dense<0.000000e+00> : vector<8x128xf32>
    %2 = tpu.matmul %0, %1, %cst {dimension_numbers = #tpu.dot_dimension_numbers<[1], [0], [0], [1], [0, 0, 1, 1], [], []>, precision = #tpu.contract_precision<fp32>} : vector<8x64xf32>, vector<64x128xf32>, vector<8x128xf32> -> vector<8x128xf32>
    %c96 = arith.constant 96 : index
    %c0_3 = arith.constant 0 : index
    %3 = vector.load %arg1[%c96, %c0_3] : memref<432x128xf32, #tpu.memory_space<vmem>>, vector<1x128xf32>
    %4 = vector.broadcast %3 : vector<1x128xf32> to vector<8x128xf32>
    %5 = arith.addf %2, %4 : vector<8x128xf32>
    %c176 = arith.constant 176 : index
    %c0_4 = arith.constant 0 : index
    %6 = vector.load %arg1[%c176, %c0_4] : memref<432x128xf32, #tpu.memory_space<vmem>>, vector<64x32xf32>
    %cst_5 = arith.constant dense<0.000000e+00> : vector<8x32xf32>
    %7 = tpu.matmul %0, %6, %cst_5 {dimension_numbers = #tpu.dot_dimension_numbers<[1], [0], [0], [1], [0, 0, 1, 1], [], []>, precision = #tpu.contract_precision<fp32>} : vector<8x64xf32>, vector<64x32xf32>, vector<8x32xf32> -> vector<8x32xf32>
    %c240 = arith.constant 240 : index
    %c0_6 = arith.constant 0 : index
    %8 = vector.load %arg1[%c240, %c0_6] : memref<432x128xf32, #tpu.memory_space<vmem>>, vector<1x32xf32>
    %9 = vector.broadcast %8 : vector<1x32xf32> to vector<8x32xf32>
    %10 = arith.addf %7, %9 : vector<8x32xf32>
    %c0_7 = arith.constant 0 : index
    %c0_8 = arith.constant 0 : index
    %11 = vector.load %arg3[%c0_7, %c0_8] : memref<16x32xf32, #tpu.memory_space<vmem>>, vector<8x32xf32>
    tpu.vector_store %arg3[%c0_7, %c0_8], %10 {strides = array<i32>} : memref<16x32xf32, #tpu.memory_space<vmem>>, vector<8x32xf32>,
    %c64 = arith.constant 64 : index
    %c0_9 = arith.constant 0 : index
    %12 = vector.load %arg1[%c64, %c0_9] : memref<432x128xf32, #tpu.memory_space<vmem>>, vector<32x128xf32>
    %13 = arith.truncf %12 : vector<32x128xf32> to vector<32x128xbf16>
    %c104 = arith.constant 104 : index
    %c0_10 = arith.constant 0 : index
    %14 = vector.load %arg1[%c104, %c0_10] : memref<432x128xf32, #tpu.memory_space<vmem>>, vector<32x128xf32>
    %15 = arith.truncf %14 : vector<32x128xf32> to vector<32x128xbf16>
    %c136 = arith.constant 136 : index
    %c0_11 = arith.constant 0 : index
    %16 = vector.load %arg1[%c136, %c0_11] : memref<432x128xf32, #tpu.memory_space<vmem>>, vector<32x128xf32>
    %17 = arith.truncf %16 : vector<32x128xf32> to vector<32x128xbf16>
    %c168 = arith.constant 168 : index
    %c0_12 = arith.constant 0 : index
    %18 = vector.load %arg1[%c168, %c0_12] : memref<432x128xf32, #tpu.memory_space<vmem>>, vector<1x128xf32>
    %cst_13 = arith.constant 0.000000e+00 : f32
    %19 = vector.broadcast %cst_13 : f32 to vector<1x32xf32>
    %cst_14 = arith.constant 0.000000e+00 : f32
    %20 = vector.broadcast %cst_14 : f32 to vector<1x32xf32>
    %cst_15 = arith.constant 0.000000e+00 : f32
    %21 = vector.broadcast %cst_15 : f32 to vector<1x32xf32>
    %cst_16 = arith.constant 0.000000e+00 : f32
    %22 = vector.broadcast %cst_16 : f32 to vector<1x32xf32>
    %23 = vector.extract_strided_slice %5 {offsets = [0, 0], sizes = [1, 128], strides = [1, 1]} : vector<8x128xf32> to vector<1x128xf32>
    %24 = arith.truncf %19 : vector<1x32xf32> to vector<1x32xbf16>
    %cst_17 = arith.constant dense<0.000000e+00> : vector<1x128xf32>
    %25 = tpu.matmul %24, %13, %cst_17 {dimension_numbers = #tpu.dot_dimension_numbers<[1], [0], [0], [1], [0, 0, 1, 1], [], []>} : vector<1x32xbf16>, vector<32x128xbf16>, vector<1x128xf32> -> vector<1x128xf32>
    %26 = arith.addf %23, %25 : vector<1x128xf32>
    %27 = arith.negf %26 : vector<1x128xf32>
    %28 = math.exp %27 : vector<1x128xf32>
    %cst_18 = arith.constant 1.000000e+00 : f32
    %29 = vector.broadcast %cst_18 : f32 to vector<1x128xf32>
    %30 = arith.addf %29, %28 : vector<1x128xf32>
    %31 = arith.divf %29, %30 : vector<1x128xf32>
    %32 = vector.extract_strided_slice %26 {offsets = [0, 64], sizes = [1, 32], strides = [1, 1]} : vector<1x128xf32> to vector<1x32xf32>
    %33 = math.tanh %32 : vector<1x32xf32>
    %34 = vector.extract_strided_slice %31 {offsets = [0, 32], sizes = [1, 32], strides = [1, 1]} : vector<1x128xf32> to vector<1x32xf32>
    %35 = arith.mulf %34, %20 : vector<1x32xf32>
    %36 = vector.extract_strided_slice %31 {offsets = [0, 0], sizes = [1, 32], strides = [1, 1]} : vector<1x128xf32> to vector<1x32xf32>
    %37 = arith.mulf %36, %33 : vector<1x32xf32>
    %38 = arith.addf %35, %37 : vector<1x32xf32>
    %39 = vector.extract_strided_slice %31 {offsets = [0, 96], sizes = [1, 32], strides = [1, 1]} : vector<1x128xf32> to vector<1x32xf32>
    %40 = math.tanh %38 : vector<1x32xf32>
    %41 = arith.mulf %39, %40 : vector<1x32xf32>
    %42 = arith.truncf %41 : vector<1x32xf32> to vector<1x32xbf16>
    %cst_19 = arith.constant dense<0.000000e+00> : vector<1x128xf32>
    %43 = tpu.matmul %42, %15, %cst_19 {dimension_numbers = #tpu.dot_dimension_numbers<[1], [0], [0], [1], [0, 0, 1, 1], [], []>} : vector<1x32xbf16>, vector<32x128xbf16>, vector<1x128xf32> -> vector<1x128xf32>
    %44 = arith.truncf %21 : vector<1x32xf32> to vector<1x32xbf16>
    %cst_20 = arith.constant dense<0.000000e+00> : vector<1x128xf32>
    %45 = tpu.matmul %44, %17, %cst_20 {dimension_numbers = #tpu.dot_dimension_numbers<[1], [0], [0], [1], [0, 0, 1, 1], [], []>} : vector<1x32xbf16>, vector<32x128xbf16>, vector<1x128xf32> -> vector<1x128xf32>
    %46 = arith.addf %43, %45 : vector<1x128xf32>
    %47 = arith.addf %46, %18 : vector<1x128xf32>
    %48 = arith.negf %47 : vector<1x128xf32>
    %49 = math.exp %48 : vector<1x128xf32>
    %cst_21 = arith.constant 1.000000e+00 : f32
    %50 = vector.broadcast %cst_21 : f32 to vector<1x128xf32>
    %51 = arith.addf %50, %49 : vector<1x128xf32>
    %52 = arith.divf %50, %51 : vector<1x128xf32>
    %53 = vector.extract_strided_slice %47 {offsets = [0, 64], sizes = [1, 32], strides = [1, 1]} : vector<1x128xf32> to vector<1x32xf32>
    %54 = math.tanh %53 : vector<1x32xf32>
    %55 = vector.extract_strided_slice %52 {offsets = [0, 32], sizes = [1, 32], strides = [1, 1]} : vector<1x128xf32> to vector<1x32xf32>
    %56 = arith.mulf %55, %22 : vector<1x32xf32>
    %57 = vector.extract_strided_slice %52 {offsets = [0, 0], sizes = [1, 32], strides = [1, 1]} : vector<1x128xf32> to vector<1x32xf32>
    %58 = arith.mulf %57, %54 : vector<1x32xf32>
    %59 = arith.addf %56, %58 : vector<1x32xf32>
    %60 = vector.extract_strided_slice %52 {offsets = [0, 96], sizes = [1, 32], strides = [1, 1]} : vector<1x128xf32> to vector<1x32xf32>
    %61 = math.tanh %59 : vector<1x32xf32>
    %62 = arith.mulf %60, %61 : vector<1x32xf32>
    %c8 = arith.constant 8 : index
    %c0_22 = arith.constant 0 : index
    %63 = vector.load %arg3[%c8, %c0_22] : memref<16x32xf32, #tpu.memory_space<vmem>>, vector<1x32xf32>
    tpu.vector_store %arg3[%c8, %c0_22], %62 {strides = array<i32>} : memref<16x32xf32, #tpu.memory_space<vmem>>, vector<1x32xf32>,
    %64 = vector.extract_strided_slice %5 {offsets = [1, 0], sizes = [1, 128], strides = [1, 1]} : vector<8x128xf32> to vector<1x128xf32>
    %65 = arith.truncf %41 : vector<1x32xf32> to vector<1x32xbf16>
    %cst_23 = arith.constant dense<0.000000e+00> : vector<1x128xf32>
    %66 = tpu.matmul %65, %13, %cst_23 {dimension_numbers = #tpu.dot_dimension_numbers<[1], [0], [0], [1], [0, 0, 1, 1], [], []>} : vector<1x32xbf16>, vector<32x128xbf16>, vector<1x128xf32> -> vector<1x128xf32>
    %67 = arith.addf %64, %66 : vector<1x128xf32>
    %68 = arith.negf %67 : vector<1x128xf32>
    %69 = math.exp %68 : vector<1x128xf32>
    %cst_24 = arith.constant 1.000000e+00 : f32
    %70 = vector.broadcast %cst_24 : f32 to vector<1x128xf32>
    %71 = arith.addf %70, %69 : vector<1x128xf32>
    %72 = arith.divf %70, %71 : vector<1x128xf32>
    %73 = vector.extract_strided_slice %67 {offsets = [0, 64], sizes = [1, 32], strides = [1, 1]} : vector<1x128xf32> to vector<1x32xf32>
    %74 = math.tanh %73 : vector<1x32xf32>
    %75 = vector.extract_strided_slice %72 {offsets = [0, 32], sizes = [1, 32], strides = [1, 1]} : vector<1x128xf32> to vector<1x32xf32>
    %76 = arith.mulf %75, %38 : vector<1x32xf32>
    %77 = vector.extract_strided_slice %72 {offsets = [0, 0], sizes = [1, 32], strides = [1, 1]} : vector<1x128xf32> to vector<1x32xf32>
    %78 = arith.mulf %77, %74 : vector<1x32xf32>
    %79 = arith.addf %76, %78 : vector<1x32xf32>
    %80 = vector.extract_strided_slice %72 {offsets = [0, 96], sizes = [1, 32], strides = [1, 1]} : vector<1x128xf32> to vector<1x32xf32>
    %81 = math.tanh %79 : vector<1x32xf32>
    %82 = arith.mulf %80, %81 : vector<1x32xf32>
    %83 = arith.truncf %82 : vector<1x32xf32> to vector<1x32xbf16>
    %cst_25 = arith.constant dense<0.000000e+00> : vector<1x128xf32>
    %84 = tpu.matmul %83, %15, %cst_25 {dimension_numbers = #tpu.dot_dimension_numbers<[1], [0], [0], [1], [0, 0, 1, 1], [], []>} : vector<1x32xbf16>, vector<32x128xbf16>, vector<1x128xf32> -> vector<1x128xf32>
    %85 = arith.truncf %62 : vector<1x32xf32> to vector<1x32xbf16>
    %cst_26 = arith.constant dense<0.000000e+00> : vector<1x128xf32>
    %86 = tpu.matmul %85, %17, %cst_26 {dimension_numbers = #tpu.dot_dimension_numbers<[1], [0], [0], [1], [0, 0, 1, 1], [], []>} : vector<1x32xbf16>, vector<32x128xbf16>, vector<1x128xf32> -> vector<1x128xf32>
    %87 = arith.addf %84, %86 : vector<1x128xf32>
    %88 = arith.addf %87, %18 : vector<1x128xf32>
    %89 = arith.negf %88 : vector<1x128xf32>
    %90 = math.exp %89 : vector<1x128xf32>
    %cst_27 = arith.constant 1.000000e+00 : f32
    %91 = vector.broadcast %cst_27 : f32 to vector<1x128xf32>
    %92 = arith.addf %91, %90 : vector<1x128xf32>
    %93 = arith.divf %91, %92 : vector<1x128xf32>
    %94 = vector.extract_strided_slice %88 {offsets = [0, 64], sizes = [1, 32], strides = [1, 1]} : vector<1x128xf32> to vector<1x32xf32>
    %95 = math.tanh %94 : vector<1x32xf32>
    %96 = vector.extract_strided_slice %93 {offsets = [0, 32], sizes = [1, 32], strides = [1, 1]} : vector<1x128xf32> to vector<1x32xf32>
    %97 = arith.mulf %96, %59 : vector<1x32xf32>
    %98 = vector.extract_strided_slice %93 {offsets = [0, 0], sizes = [1, 32], strides = [1, 1]} : vector<1x128xf32> to vector<1x32xf32>
    %99 = arith.mulf %98, %95 : vector<1x32xf32>
    %100 = arith.addf %97, %99 : vector<1x32xf32>
    %101 = vector.extract_strided_slice %93 {offsets = [0, 96], sizes = [1, 32], strides = [1, 1]} : vector<1x128xf32> to vector<1x32xf32>
    %102 = math.tanh %100 : vector<1x32xf32>
    %103 = arith.mulf %101, %102 : vector<1x32xf32>
    %c9 = arith.constant 9 : index
    %c0_28 = arith.constant 0 : index
    %104 = vector.load %arg3[%c9, %c0_28] : memref<16x32xf32, #tpu.memory_space<vmem>>, vector<1x32xf32>
    tpu.vector_store %arg3[%c9, %c0_28], %103 {strides = array<i32>} : memref<16x32xf32, #tpu.memory_space<vmem>>, vector<1x32xf32>,
    %105 = vector.extract_strided_slice %5 {offsets = [2, 0], sizes = [1, 128], strides = [1, 1]} : vector<8x128xf32> to vector<1x128xf32>
    %106 = arith.truncf %82 : vector<1x32xf32> to vector<1x32xbf16>
    %cst_29 = arith.constant dense<0.000000e+00> : vector<1x128xf32>
    %107 = tpu.matmul %106, %13, %cst_29 {dimension_numbers = #tpu.dot_dimension_numbers<[1], [0], [0], [1], [0, 0, 1, 1], [], []>} : vector<1x32xbf16>, vector<32x128xbf16>, vector<1x128xf32> -> vector<1x128xf32>
    %108 = arith.addf %105, %107 : vector<1x128xf32>
    %109 = arith.negf %108 : vector<1x128xf32>
    %110 = math.exp %109 : vector<1x128xf32>
    %cst_30 = arith.constant 1.000000e+00 : f32
    %111 = vector.broadcast %cst_30 : f32 to vector<1x128xf32>
    %112 = arith.addf %111, %110 : vector<1x128xf32>
    %113 = arith.divf %111, %112 : vector<1x128xf32>
    %114 = vector.extract_strided_slice %108 {offsets = [0, 64], sizes = [1, 32], strides = [1, 1]} : vector<1x128xf32> to vector<1x32xf32>
    %115 = math.tanh %114 : vector<1x32xf32>
    %116 = vector.extract_strided_slice %113 {offsets = [0, 32], sizes = [1, 32], strides = [1, 1]} : vector<1x128xf32> to vector<1x32xf32>
    %117 = arith.mulf %116, %79 : vector<1x32xf32>
    %118 = vector.extract_strided_slice %113 {offsets = [0, 0], sizes = [1, 32], strides = [1, 1]} : vector<1x128xf32> to vector<1x32xf32>
    %119 = arith.mulf %118, %115 : vector<1x32xf32>
    %120 = arith.addf %117, %119 : vector<1x32xf32>
    %121 = vector.extract_strided_slice %113 {offsets = [0, 96], sizes = [1, 32], strides = [1, 1]} : vector<1x128xf32> to vector<1x32xf32>
    %122 = math.tanh %120 : vector<1x32xf32>
    %123 = arith.mulf %121, %122 : vector<1x32xf32>
    %124 = arith.truncf %123 : vector<1x32xf32> to vector<1x32xbf16>
    %cst_31 = arith.constant dense<0.000000e+00> : vector<1x128xf32>
    %125 = tpu.matmul %124, %15, %cst_31 {dimension_numbers = #tpu.dot_dimension_numbers<[1], [0], [0], [1], [0, 0, 1, 1], [], []>} : vector<1x32xbf16>, vector<32x128xbf16>, vector<1x128xf32> -> vector<1x128xf32>
    %126 = arith.truncf %103 : vector<1x32xf32> to vector<1x32xbf16>
    %cst_32 = arith.constant dense<0.000000e+00> : vector<1x128xf32>
    %127 = tpu.matmul %126, %17, %cst_32 {dimension_numbers = #tpu.dot_dimension_numbers<[1], [0], [0], [1], [0, 0, 1, 1], [], []>} : vector<1x32xbf16>, vector<32x128xbf16>, vector<1x128xf32> -> vector<1x128xf32>
    %128 = arith.addf %125, %127 : vector<1x128xf32>
    %129 = arith.addf %128, %18 : vector<1x128xf32>
    %130 = arith.negf %129 : vector<1x128xf32>
    %131 = math.exp %130 : vector<1x128xf32>
    %cst_33 = arith.constant 1.000000e+00 : f32
    %132 = vector.broadcast %cst_33 : f32 to vector<1x128xf32>
    %133 = arith.addf %132, %131 : vector<1x128xf32>
    %134 = arith.divf %132, %133 : vector<1x128xf32>
    %135 = vector.extract_strided_slice %129 {offsets = [0, 64], sizes = [1, 32], strides = [1, 1]} : vector<1x128xf32> to vector<1x32xf32>
    %136 = math.tanh %135 : vector<1x32xf32>
    %137 = vector.extract_strided_slice %134 {offsets = [0, 32], sizes = [1, 32], strides = [1, 1]} : vector<1x128xf32> to vector<1x32xf32>
    %138 = arith.mulf %137, %100 : vector<1x32xf32>
    %139 = vector.extract_strided_slice %134 {offsets = [0, 0], sizes = [1, 32], strides = [1, 1]} : vector<1x128xf32> to vector<1x32xf32>
    %140 = arith.mulf %139, %136 : vector<1x32xf32>
    %141 = arith.addf %138, %140 : vector<1x32xf32>
    %142 = vector.extract_strided_slice %134 {offsets = [0, 96], sizes = [1, 32], strides = [1, 1]} : vector<1x128xf32> to vector<1x32xf32>
    %143 = math.tanh %141 : vector<1x32xf32>
    %144 = arith.mulf %142, %143 : vector<1x32xf32>
    %c10 = arith.constant 10 : index
    %c0_34 = arith.constant 0 : index
    %145 = vector.load %arg3[%c10, %c0_34] : memref<16x32xf32, #tpu.memory_space<vmem>>, vector<1x32xf32>
    tpu.vector_store %arg3[%c10, %c0_34], %144 {strides = array<i32>} : memref<16x32xf32, #tpu.memory_space<vmem>>, vector<1x32xf32>,
    %146 = vector.extract_strided_slice %5 {offsets = [3, 0], sizes = [1, 128], strides = [1, 1]} : vector<8x128xf32> to vector<1x128xf32>
    %147 = arith.truncf %123 : vector<1x32xf32> to vector<1x32xbf16>
    %cst_35 = arith.constant dense<0.000000e+00> : vector<1x128xf32>
    %148 = tpu.matmul %147, %13, %cst_35 {dimension_numbers = #tpu.dot_dimension_numbers<[1], [0], [0], [1], [0, 0, 1, 1], [], []>} : vector<1x32xbf16>, vector<32x128xbf16>, vector<1x128xf32> -> vector<1x128xf32>
    %149 = arith.addf %146, %148 : vector<1x128xf32>
    %150 = arith.negf %149 : vector<1x128xf32>
    %151 = math.exp %150 : vector<1x128xf32>
    %cst_36 = arith.constant 1.000000e+00 : f32
    %152 = vector.broadcast %cst_36 : f32 to vector<1x128xf32>
    %153 = arith.addf %152, %151 : vector<1x128xf32>
    %154 = arith.divf %152, %153 : vector<1x128xf32>
    %155 = vector.extract_strided_slice %149 {offsets = [0, 64], sizes = [1, 32], strides = [1, 1]} : vector<1x128xf32> to vector<1x32xf32>
    %156 = math.tanh %155 : vector<1x32xf32>
    %157 = vector.extract_strided_slice %154 {offsets = [0, 32], sizes = [1, 32], strides = [1, 1]} : vector<1x128xf32> to vector<1x32xf32>
    %158 = arith.mulf %157, %120 : vector<1x32xf32>
    %159 = vector.extract_strided_slice %154 {offsets = [0, 0], sizes = [1, 32], strides = [1, 1]} : vector<1x128xf32> to vector<1x32xf32>
    %160 = arith.mulf %159, %156 : vector<1x32xf32>
    %161 = arith.addf %158, %160 : vector<1x32xf32>
    %162 = vector.extract_strided_slice %154 {offsets = [0, 96], sizes = [1, 32], strides = [1, 1]} : vector<1x128xf32> to vector<1x32xf32>
    %163 = math.tanh %161 : vector<1x32xf32>
    %164 = arith.mulf %162, %163 : vector<1x32xf32>
    %165 = arith.truncf %164 : vector<1x32xf32> to vector<1x32xbf16>
    %cst_37 = arith.constant dense<0.000000e+00> : vector<1x128xf32>
    %166 = tpu.matmul %165, %15, %cst_37 {dimension_numbers = #tpu.dot_dimension_numbers<[1], [0], [0], [1], [0, 0, 1, 1], [], []>} : vector<1x32xbf16>, vector<32x128xbf16>, vector<1x128xf32> -> vector<1x128xf32>
    %167 = arith.truncf %144 : vector<1x32xf32> to vector<1x32xbf16>
    %cst_38 = arith.constant dense<0.000000e+00> : vector<1x128xf32>
    %168 = tpu.matmul %167, %17, %cst_38 {dimension_numbers = #tpu.dot_dimension_numbers<[1], [0], [0], [1], [0, 0, 1, 1], [], []>} : vector<1x32xbf16>, vector<32x128xbf16>, vector<1x128xf32> -> vector<1x128xf32>
    %169 = arith.addf %166, %168 : vector<1x128xf32>
    %170 = arith.addf %169, %18 : vector<1x128xf32>
    %171 = arith.negf %170 : vector<1x128xf32>
    %172 = math.exp %171 : vector<1x128xf32>
    %cst_39 = arith.constant 1.000000e+00 : f32
    %173 = vector.broadcast %cst_39 : f32 to vector<1x128xf32>
    %174 = arith.addf %173, %172 : vector<1x128xf32>
    %175 = arith.divf %173, %174 : vector<1x128xf32>
    %176 = vector.extract_strided_slice %170 {offsets = [0, 64], sizes = [1, 32], strides = [1, 1]} : vector<1x128xf32> to vector<1x32xf32>
    %177 = math.tanh %176 : vector<1x32xf32>
    %178 = vector.extract_strided_slice %175 {offsets = [0, 32], sizes = [1, 32], strides = [1, 1]} : vector<1x128xf32> to vector<1x32xf32>
    %179 = arith.mulf %178, %141 : vector<1x32xf32>
    %180 = vector.extract_strided_slice %175 {offsets = [0, 0], sizes = [1, 32], strides = [1, 1]} : vector<1x128xf32> to vector<1x32xf32>
    %181 = arith.mulf %180, %177 : vector<1x32xf32>
    %182 = arith.addf %179, %181 : vector<1x32xf32>
    %183 = vector.extract_strided_slice %175 {offsets = [0, 96], sizes = [1, 32], strides = [1, 1]} : vector<1x128xf32> to vector<1x32xf32>
    %184 = math.tanh %182 : vector<1x32xf32>
    %185 = arith.mulf %183, %184 : vector<1x32xf32>
    %c11 = arith.constant 11 : index
    %c0_40 = arith.constant 0 : index
    %186 = vector.load %arg3[%c11, %c0_40] : memref<16x32xf32, #tpu.memory_space<vmem>>, vector<1x32xf32>
    tpu.vector_store %arg3[%c11, %c0_40], %185 {strides = array<i32>} : memref<16x32xf32, #tpu.memory_space<vmem>>, vector<1x32xf32>,
    %187 = vector.extract_strided_slice %5 {offsets = [4, 0], sizes = [1, 128], strides = [1, 1]} : vector<8x128xf32> to vector<1x128xf32>
    %188 = arith.truncf %164 : vector<1x32xf32> to vector<1x32xbf16>
    %cst_41 = arith.constant dense<0.000000e+00> : vector<1x128xf32>
    %189 = tpu.matmul %188, %13, %cst_41 {dimension_numbers = #tpu.dot_dimension_numbers<[1], [0], [0], [1], [0, 0, 1, 1], [], []>} : vector<1x32xbf16>, vector<32x128xbf16>, vector<1x128xf32> -> vector<1x128xf32>
    %190 = arith.addf %187, %189 : vector<1x128xf32>
    %191 = arith.negf %190 : vector<1x128xf32>
    %192 = math.exp %191 : vector<1x128xf32>
    %cst_42 = arith.constant 1.000000e+00 : f32
    %193 = vector.broadcast %cst_42 : f32 to vector<1x128xf32>
    %194 = arith.addf %193, %192 : vector<1x128xf32>
    %195 = arith.divf %193, %194 : vector<1x128xf32>
    %196 = vector.extract_strided_slice %190 {offsets = [0, 64], sizes = [1, 32], strides = [1, 1]} : vector<1x128xf32> to vector<1x32xf32>
    %197 = math.tanh %196 : vector<1x32xf32>
    %198 = vector.extract_strided_slice %195 {offsets = [0, 32], sizes = [1, 32], strides = [1, 1]} : vector<1x128xf32> to vector<1x32xf32>
    %199 = arith.mulf %198, %161 : vector<1x32xf32>
    %200 = vector.extract_strided_slice %195 {offsets = [0, 0], sizes = [1, 32], strides = [1, 1]} : vector<1x128xf32> to vector<1x32xf32>
    %201 = arith.mulf %200, %197 : vector<1x32xf32>
    %202 = arith.addf %199, %201 : vector<1x32xf32>
    %203 = vector.extract_strided_slice %195 {offsets = [0, 96], sizes = [1, 32], strides = [1, 1]} : vector<1x128xf32> to vector<1x32xf32>
    %204 = math.tanh %202 : vector<1x32xf32>
    %205 = arith.mulf %203, %204 : vector<1x32xf32>
    %206 = arith.truncf %205 : vector<1x32xf32> to vector<1x32xbf16>
    %cst_43 = arith.constant dense<0.000000e+00> : vector<1x128xf32>
    %207 = tpu.matmul %206, %15, %cst_43 {dimension_numbers = #tpu.dot_dimension_numbers<[1], [0], [0], [1], [0, 0, 1, 1], [], []>} : vector<1x32xbf16>, vector<32x128xbf16>, vector<1x128xf32> -> vector<1x128xf32>
    %208 = arith.truncf %185 : vector<1x32xf32> to vector<1x32xbf16>
    %cst_44 = arith.constant dense<0.000000e+00> : vector<1x128xf32>
    %209 = tpu.matmul %208, %17, %cst_44 {dimension_numbers = #tpu.dot_dimension_numbers<[1], [0], [0], [1], [0, 0, 1, 1], [], []>} : vector<1x32xbf16>, vector<32x128xbf16>, vector<1x128xf32> -> vector<1x128xf32>
    %210 = arith.addf %207, %209 : vector<1x128xf32>
    %211 = arith.addf %210, %18 : vector<1x128xf32>
    %212 = arith.negf %211 : vector<1x128xf32>
    %213 = math.exp %212 : vector<1x128xf32>
    %cst_45 = arith.constant 1.000000e+00 : f32
    %214 = vector.broadcast %cst_45 : f32 to vector<1x128xf32>
    %215 = arith.addf %214, %213 : vector<1x128xf32>
    %216 = arith.divf %214, %215 : vector<1x128xf32>
    %217 = vector.extract_strided_slice %211 {offsets = [0, 64], sizes = [1, 32], strides = [1, 1]} : vector<1x128xf32> to vector<1x32xf32>
    %218 = math.tanh %217 : vector<1x32xf32>
    %219 = vector.extract_strided_slice %216 {offsets = [0, 32], sizes = [1, 32], strides = [1, 1]} : vector<1x128xf32> to vector<1x32xf32>
    %220 = arith.mulf %219, %182 : vector<1x32xf32>
    %221 = vector.extract_strided_slice %216 {offsets = [0, 0], sizes = [1, 32], strides = [1, 1]} : vector<1x128xf32> to vector<1x32xf32>
    %222 = arith.mulf %221, %218 : vector<1x32xf32>
    %223 = arith.addf %220, %222 : vector<1x32xf32>
    %224 = vector.extract_strided_slice %216 {offsets = [0, 96], sizes = [1, 32], strides = [1, 1]} : vector<1x128xf32> to vector<1x32xf32>
    %225 = math.tanh %223 : vector<1x32xf32>
    %226 = arith.mulf %224, %225 : vector<1x32xf32>
    %c12 = arith.constant 12 : index
    %c0_46 = arith.constant 0 : index
    %227 = vector.load %arg3[%c12, %c0_46] : memref<16x32xf32, #tpu.memory_space<vmem>>, vector<1x32xf32>
    tpu.vector_store %arg3[%c12, %c0_46], %226 {strides = array<i32>} : memref<16x32xf32, #tpu.memory_space<vmem>>, vector<1x32xf32>,
    %228 = vector.extract_strided_slice %5 {offsets = [5, 0], sizes = [1, 128], strides = [1, 1]} : vector<8x128xf32> to vector<1x128xf32>
    %229 = arith.truncf %205 : vector<1x32xf32> to vector<1x32xbf16>
    %cst_47 = arith.constant dense<0.000000e+00> : vector<1x128xf32>
    %230 = tpu.matmul %229, %13, %cst_47 {dimension_numbers = #tpu.dot_dimension_numbers<[1], [0], [0], [1], [0, 0, 1, 1], [], []>} : vector<1x32xbf16>, vector<32x128xbf16>, vector<1x128xf32> -> vector<1x128xf32>
    %231 = arith.addf %228, %230 : vector<1x128xf32>
    %232 = arith.negf %231 : vector<1x128xf32>
    %233 = math.exp %232 : vector<1x128xf32>
    %cst_48 = arith.constant 1.000000e+00 : f32
    %234 = vector.broadcast %cst_48 : f32 to vector<1x128xf32>
    %235 = arith.addf %234, %233 : vector<1x128xf32>
    %236 = arith.divf %234, %235 : vector<1x128xf32>
    %237 = vector.extract_strided_slice %231 {offsets = [0, 64], sizes = [1, 32], strides = [1, 1]} : vector<1x128xf32> to vector<1x32xf32>
    %238 = math.tanh %237 : vector<1x32xf32>
    %239 = vector.extract_strided_slice %236 {offsets = [0, 32], sizes = [1, 32], strides = [1, 1]} : vector<1x128xf32> to vector<1x32xf32>
    %240 = arith.mulf %239, %202 : vector<1x32xf32>
    %241 = vector.extract_strided_slice %236 {offsets = [0, 0], sizes = [1, 32], strides = [1, 1]} : vector<1x128xf32> to vector<1x32xf32>
    %242 = arith.mulf %241, %238 : vector<1x32xf32>
    %243 = arith.addf %240, %242 : vector<1x32xf32>
    %244 = vector.extract_strided_slice %236 {offsets = [0, 96], sizes = [1, 32], strides = [1, 1]} : vector<1x128xf32> to vector<1x32xf32>
    %245 = math.tanh %243 : vector<1x32xf32>
    %246 = arith.mulf %244, %245 : vector<1x32xf32>
    %247 = arith.truncf %246 : vector<1x32xf32> to vector<1x32xbf16>
    %cst_49 = arith.constant dense<0.000000e+00> : vector<1x128xf32>
    %248 = tpu.matmul %247, %15, %cst_49 {dimension_numbers = #tpu.dot_dimension_numbers<[1], [0], [0], [1], [0, 0, 1, 1], [], []>} : vector<1x32xbf16>, vector<32x128xbf16>, vector<1x128xf32> -> vector<1x128xf32>
    %249 = arith.truncf %226 : vector<1x32xf32> to vector<1x32xbf16>
    %cst_50 = arith.constant dense<0.000000e+00> : vector<1x128xf32>
    %250 = tpu.matmul %249, %17, %cst_50 {dimension_numbers = #tpu.dot_dimension_numbers<[1], [0], [0], [1], [0, 0, 1, 1], [], []>} : vector<1x32xbf16>, vector<32x128xbf16>, vector<1x128xf32> -> vector<1x128xf32>
    %251 = arith.addf %248, %250 : vector<1x128xf32>
    %252 = arith.addf %251, %18 : vector<1x128xf32>
    %253 = arith.negf %252 : vector<1x128xf32>
    %254 = math.exp %253 : vector<1x128xf32>
    %cst_51 = arith.constant 1.000000e+00 : f32
    %255 = vector.broadcast %cst_51 : f32 to vector<1x128xf32>
    %256 = arith.addf %255, %254 : vector<1x128xf32>
    %257 = arith.divf %255, %256 : vector<1x128xf32>
    %258 = vector.extract_strided_slice %252 {offsets = [0, 64], sizes = [1, 32], strides = [1, 1]} : vector<1x128xf32> to vector<1x32xf32>
    %259 = math.tanh %258 : vector<1x32xf32>
    %260 = vector.extract_strided_slice %257 {offsets = [0, 32], sizes = [1, 32], strides = [1, 1]} : vector<1x128xf32> to vector<1x32xf32>
    %261 = arith.mulf %260, %223 : vector<1x32xf32>
    %262 = vector.extract_strided_slice %257 {offsets = [0, 0], sizes = [1, 32], strides = [1, 1]} : vector<1x128xf32> to vector<1x32xf32>
    %263 = arith.mulf %262, %259 : vector<1x32xf32>
    %264 = arith.addf %261, %263 : vector<1x32xf32>
    %265 = vector.extract_strided_slice %257 {offsets = [0, 96], sizes = [1, 32], strides = [1, 1]} : vector<1x128xf32> to vector<1x32xf32>
    %266 = math.tanh %264 : vector<1x32xf32>
    %267 = arith.mulf %265, %266 : vector<1x32xf32>
    %c13 = arith.constant 13 : index
    %c0_52 = arith.constant 0 : index
    %268 = vector.load %arg3[%c13, %c0_52] : memref<16x32xf32, #tpu.memory_space<vmem>>, vector<1x32xf32>
    tpu.vector_store %arg3[%c13, %c0_52], %267 {strides = array<i32>} : memref<16x32xf32, #tpu.memory_space<vmem>>, vector<1x32xf32>,
    %269 = vector.extract_strided_slice %5 {offsets = [6, 0], sizes = [1, 128], strides = [1, 1]} : vector<8x128xf32> to vector<1x128xf32>
    %270 = arith.truncf %246 : vector<1x32xf32> to vector<1x32xbf16>
    %cst_53 = arith.constant dense<0.000000e+00> : vector<1x128xf32>
    %271 = tpu.matmul %270, %13, %cst_53 {dimension_numbers = #tpu.dot_dimension_numbers<[1], [0], [0], [1], [0, 0, 1, 1], [], []>} : vector<1x32xbf16>, vector<32x128xbf16>, vector<1x128xf32> -> vector<1x128xf32>
    %272 = arith.addf %269, %271 : vector<1x128xf32>
    %273 = arith.negf %272 : vector<1x128xf32>
    %274 = math.exp %273 : vector<1x128xf32>
    %cst_54 = arith.constant 1.000000e+00 : f32
    %275 = vector.broadcast %cst_54 : f32 to vector<1x128xf32>
    %276 = arith.addf %275, %274 : vector<1x128xf32>
    %277 = arith.divf %275, %276 : vector<1x128xf32>
    %278 = vector.extract_strided_slice %272 {offsets = [0, 64], sizes = [1, 32], strides = [1, 1]} : vector<1x128xf32> to vector<1x32xf32>
    %279 = math.tanh %278 : vector<1x32xf32>
    %280 = vector.extract_strided_slice %277 {offsets = [0, 32], sizes = [1, 32], strides = [1, 1]} : vector<1x128xf32> to vector<1x32xf32>
    %281 = arith.mulf %280, %243 : vector<1x32xf32>
    %282 = vector.extract_strided_slice %277 {offsets = [0, 0], sizes = [1, 32], strides = [1, 1]} : vector<1x128xf32> to vector<1x32xf32>
    %283 = arith.mulf %282, %279 : vector<1x32xf32>
    %284 = arith.addf %281, %283 : vector<1x32xf32>
    %285 = vector.extract_strided_slice %277 {offsets = [0, 96], sizes = [1, 32], strides = [1, 1]} : vector<1x128xf32> to vector<1x32xf32>
    %286 = math.tanh %284 : vector<1x32xf32>
    %287 = arith.mulf %285, %286 : vector<1x32xf32>
    %288 = arith.truncf %287 : vector<1x32xf32> to vector<1x32xbf16>
    %cst_55 = arith.constant dense<0.000000e+00> : vector<1x128xf32>
    %289 = tpu.matmul %288, %15, %cst_55 {dimension_numbers = #tpu.dot_dimension_numbers<[1], [0], [0], [1], [0, 0, 1, 1], [], []>} : vector<1x32xbf16>, vector<32x128xbf16>, vector<1x128xf32> -> vector<1x128xf32>
    %290 = arith.truncf %267 : vector<1x32xf32> to vector<1x32xbf16>
    %cst_56 = arith.constant dense<0.000000e+00> : vector<1x128xf32>
    %291 = tpu.matmul %290, %17, %cst_56 {dimension_numbers = #tpu.dot_dimension_numbers<[1], [0], [0], [1], [0, 0, 1, 1], [], []>} : vector<1x32xbf16>, vector<32x128xbf16>, vector<1x128xf32> -> vector<1x128xf32>
    %292 = arith.addf %289, %291 : vector<1x128xf32>
    %293 = arith.addf %292, %18 : vector<1x128xf32>
    %294 = arith.negf %293 : vector<1x128xf32>
    %295 = math.exp %294 : vector<1x128xf32>
    %cst_57 = arith.constant 1.000000e+00 : f32
    %296 = vector.broadcast %cst_57 : f32 to vector<1x128xf32>
    %297 = arith.addf %296, %295 : vector<1x128xf32>
    %298 = arith.divf %296, %297 : vector<1x128xf32>
    %299 = vector.extract_strided_slice %293 {offsets = [0, 64], sizes = [1, 32], strides = [1, 1]} : vector<1x128xf32> to vector<1x32xf32>
    %300 = math.tanh %299 : vector<1x32xf32>
    %301 = vector.extract_strided_slice %298 {offsets = [0, 32], sizes = [1, 32], strides = [1, 1]} : vector<1x128xf32> to vector<1x32xf32>
    %302 = arith.mulf %301, %264 : vector<1x32xf32>
    %303 = vector.extract_strided_slice %298 {offsets = [0, 0], sizes = [1, 32], strides = [1, 1]} : vector<1x128xf32> to vector<1x32xf32>
    %304 = arith.mulf %303, %300 : vector<1x32xf32>
    %305 = arith.addf %302, %304 : vector<1x32xf32>
    %306 = vector.extract_strided_slice %298 {offsets = [0, 96], sizes = [1, 32], strides = [1, 1]} : vector<1x128xf32> to vector<1x32xf32>
    %307 = math.tanh %305 : vector<1x32xf32>
    %308 = arith.mulf %306, %307 : vector<1x32xf32>
    %c14 = arith.constant 14 : index
    %c0_58 = arith.constant 0 : index
    %309 = vector.load %arg3[%c14, %c0_58] : memref<16x32xf32, #tpu.memory_space<vmem>>, vector<1x32xf32>
    tpu.vector_store %arg3[%c14, %c0_58], %308 {strides = array<i32>} : memref<16x32xf32, #tpu.memory_space<vmem>>, vector<1x32xf32>,
    %310 = vector.extract_strided_slice %5 {offsets = [7, 0], sizes = [1, 128], strides = [1, 1]} : vector<8x128xf32> to vector<1x128xf32>
    %311 = arith.truncf %287 : vector<1x32xf32> to vector<1x32xbf16>
    %cst_59 = arith.constant dense<0.000000e+00> : vector<1x128xf32>
    %312 = tpu.matmul %311, %13, %cst_59 {dimension_numbers = #tpu.dot_dimension_numbers<[1], [0], [0], [1], [0, 0, 1, 1], [], []>} : vector<1x32xbf16>, vector<32x128xbf16>, vector<1x128xf32> -> vector<1x128xf32>
    %313 = arith.addf %310, %312 : vector<1x128xf32>
    %314 = arith.negf %313 : vector<1x128xf32>
    %315 = math.exp %314 : vector<1x128xf32>
    %cst_60 = arith.constant 1.000000e+00 : f32
    %316 = vector.broadcast %cst_60 : f32 to vector<1x128xf32>
    %317 = arith.addf %316, %315 : vector<1x128xf32>
    %318 = arith.divf %316, %317 : vector<1x128xf32>
    %319 = vector.extract_strided_slice %313 {offsets = [0, 64], sizes = [1, 32], strides = [1, 1]} : vector<1x128xf32> to vector<1x32xf32>
    %320 = math.tanh %319 : vector<1x32xf32>
    %321 = vector.extract_strided_slice %318 {offsets = [0, 32], sizes = [1, 32], strides = [1, 1]} : vector<1x128xf32> to vector<1x32xf32>
    %322 = arith.mulf %321, %284 : vector<1x32xf32>
    %323 = vector.extract_strided_slice %318 {offsets = [0, 0], sizes = [1, 32], strides = [1, 1]} : vector<1x128xf32> to vector<1x32xf32>
    %324 = arith.mulf %323, %320 : vector<1x32xf32>
    %325 = arith.addf %322, %324 : vector<1x32xf32>
    %326 = vector.extract_strided_slice %318 {offsets = [0, 96], sizes = [1, 32], strides = [1, 1]} : vector<1x128xf32> to vector<1x32xf32>
    %327 = math.tanh %325 : vector<1x32xf32>
    %328 = arith.mulf %326, %327 : vector<1x32xf32>
    %329 = arith.truncf %328 : vector<1x32xf32> to vector<1x32xbf16>
    %cst_61 = arith.constant dense<0.000000e+00> : vector<1x128xf32>
    %330 = tpu.matmul %329, %15, %cst_61 {dimension_numbers = #tpu.dot_dimension_numbers<[1], [0], [0], [1], [0, 0, 1, 1], [], []>} : vector<1x32xbf16>, vector<32x128xbf16>, vector<1x128xf32> -> vector<1x128xf32>
    %331 = arith.truncf %308 : vector<1x32xf32> to vector<1x32xbf16>
    %cst_62 = arith.constant dense<0.000000e+00> : vector<1x128xf32>
    %332 = tpu.matmul %331, %17, %cst_62 {dimension_numbers = #tpu.dot_dimension_numbers<[1], [0], [0], [1], [0, 0, 1, 1], [], []>} : vector<1x32xbf16>, vector<32x128xbf16>, vector<1x128xf32> -> vector<1x128xf32>
    %333 = arith.addf %330, %332 : vector<1x128xf32>
    %334 = arith.addf %333, %18 : vector<1x128xf32>
    %335 = arith.negf %334 : vector<1x128xf32>
    %336 = math.exp %335 : vector<1x128xf32>
    %cst_63 = arith.constant 1.000000e+00 : f32
    %337 = vector.broadcast %cst_63 : f32 to vector<1x128xf32>
    %338 = arith.addf %337, %336 : vector<1x128xf32>
    %339 = arith.divf %337, %338 : vector<1x128xf32>
    %340 = vector.extract_strided_slice %334 {offsets = [0, 64], sizes = [1, 32], strides = [1, 1]} : vector<1x128xf32> to vector<1x32xf32>
    %341 = math.tanh %340 : vector<1x32xf32>
    %342 = vector.extract_strided_slice %339 {offsets = [0, 32], sizes = [1, 32], strides = [1, 1]} : vector<1x128xf32> to vector<1x32xf32>
    %343 = arith.mulf %342, %305 : vector<1x32xf32>
    %344 = vector.extract_strided_slice %339 {offsets = [0, 0], sizes = [1, 32], strides = [1, 1]} : vector<1x128xf32> to vector<1x32xf32>
    %345 = arith.mulf %344, %341 : vector<1x32xf32>
    %346 = arith.addf %343, %345 : vector<1x32xf32>
    %347 = vector.extract_strided_slice %339 {offsets = [0, 96], sizes = [1, 32], strides = [1, 1]} : vector<1x128xf32> to vector<1x32xf32>
    %348 = math.tanh %346 : vector<1x32xf32>
    %349 = arith.mulf %347, %348 : vector<1x32xf32>
    %c15 = arith.constant 15 : index
    %c0_64 = arith.constant 0 : index
    %350 = vector.load %arg3[%c15, %c0_64] : memref<16x32xf32, #tpu.memory_space<vmem>>, vector<1x32xf32>
    tpu.vector_store %arg3[%c15, %c0_64], %349 {strides = array<i32>} : memref<16x32xf32, #tpu.memory_space<vmem>>, vector<1x32xf32>,
    %c0_65 = arith.constant 0 : index
    %c0_66 = arith.constant 0 : index
    %351 = vector.load %arg3[%c0_65, %c0_66] : memref<16x32xf32, #tpu.memory_space<vmem>>, vector<16x32xf32>
    %c248 = arith.constant 248 : index
    %c0_67 = arith.constant 0 : index
    %352 = vector.load %arg1[%c248, %c0_67] : memref<432x128xf32, #tpu.memory_space<vmem>>, vector<32x64xf32>
    %cst_68 = arith.constant dense<0.000000e+00> : vector<16x64xf32>
    %353 = tpu.matmul %351, %352, %cst_68 {dimension_numbers = #tpu.dot_dimension_numbers<[1], [0], [0], [1], [0, 0, 1, 1], [], []>, precision = #tpu.contract_precision<fp32>} : vector<16x32xf32>, vector<32x64xf32>, vector<16x64xf32> -> vector<16x64xf32>
    %c280 = arith.constant 280 : index
    %c0_69 = arith.constant 0 : index
    %354 = vector.load %arg1[%c280, %c0_69] : memref<432x128xf32, #tpu.memory_space<vmem>>, vector<1x64xf32>
    %355 = vector.broadcast %354 : vector<1x64xf32> to vector<16x64xf32>
    %356 = arith.addf %353, %355 : vector<16x64xf32>
    %cst_70 = arith.constant 0.000000e+00 : f32
    %357 = vector.broadcast %cst_70 : f32 to vector<16x64xf32>
    %358 = arith.cmpf oge, %356, %357 : vector<16x64xf32>
    %cst_71 = arith.constant 2.000000e-01 : f32
    %359 = vector.broadcast %cst_71 : f32 to vector<16x64xf32>
    %360 = arith.mulf %359, %356 : vector<16x64xf32>
    %361 = arith.select %358, %356, %360 : vector<16x64xi1>, vector<16x64xf32>
    %c288 = arith.constant 288 : index
    %c0_72 = arith.constant 0 : index
    %362 = vector.load %arg1[%c288, %c0_72] : memref<432x128xf32, #tpu.memory_space<vmem>>, vector<64x64xf32>
    %cst_73 = arith.constant dense<0.000000e+00> : vector<16x64xf32>
    %363 = tpu.matmul %361, %362, %cst_73 {dimension_numbers = #tpu.dot_dimension_numbers<[1], [0], [0], [1], [0, 0, 1, 1], [], []>, precision = #tpu.contract_precision<fp32>} : vector<16x64xf32>, vector<64x64xf32>, vector<16x64xf32> -> vector<16x64xf32>
    %c352 = arith.constant 352 : index
    %c0_74 = arith.constant 0 : index
    %364 = vector.load %arg1[%c352, %c0_74] : memref<432x128xf32, #tpu.memory_space<vmem>>, vector<1x64xf32>
    %365 = vector.broadcast %364 : vector<1x64xf32> to vector<16x64xf32>
    %366 = arith.addf %363, %365 : vector<16x64xf32>
    %cst_75 = arith.constant 0.000000e+00 : f32
    %367 = vector.broadcast %cst_75 : f32 to vector<16x64xf32>
    %368 = arith.cmpf oge, %366, %367 : vector<16x64xf32>
    %cst_76 = arith.constant 2.000000e-01 : f32
    %369 = vector.broadcast %cst_76 : f32 to vector<16x64xf32>
    %370 = arith.mulf %369, %366 : vector<16x64xf32>
    %371 = arith.select %368, %366, %370 : vector<16x64xi1>, vector<16x64xf32>
    %c360 = arith.constant 360 : index
    %c0_77 = arith.constant 0 : index
    %372 = vector.load %arg1[%c360, %c0_77] : memref<432x128xf32, #tpu.memory_space<vmem>>, vector<64x128xf32>
    %cst_78 = arith.constant dense<0.000000e+00> : vector<16x128xf32>
    %373 = tpu.matmul %371, %372, %cst_78 {dimension_numbers = #tpu.dot_dimension_numbers<[1], [0], [0], [1], [0, 0, 1, 1], [], []>, precision = #tpu.contract_precision<fp32>} : vector<16x64xf32>, vector<64x128xf32>, vector<16x128xf32> -> vector<16x128xf32>
    %c424 = arith.constant 424 : index
    %c0_79 = arith.constant 0 : index
    %374 = vector.load %arg1[%c424, %c0_79] : memref<432x128xf32, #tpu.memory_space<vmem>>, vector<1x128xf32>
    %375 = vector.broadcast %374 : vector<1x128xf32> to vector<16x128xf32>
    %376 = arith.addf %373, %375 : vector<16x128xf32>
    %c0_80 = arith.constant 0 : index
    %c0_81 = arith.constant 0 : index
    %377 = vector.load %arg2[%c0_80, %c0_81] : memref<16x128xf32, #tpu.memory_space<vmem>>, vector<16x128xf32>
    tpu.vector_store %arg2[%c0_80, %c0_81], %376 {strides = array<i32>} : memref<16x128xf32, #tpu.memory_space<vmem>>, vector<16x128xf32>,
    return
  }
}

</mosaic_0001>

<llo_original>
// kernel: tpu_custom_call.1
$region0: #{tpu_custom_call.1}
  #allocation0 [shape = 'u32[]', space=smem, size = 0x4, offset = 0x4, fixed_abs, tag = 'smem constant byte address 0x4 - core index']
  #allocation1 [shape = 'u32[72,128]{1,0:T(1,128)}', space=vmem, size = 0x9000, scoped, tag = 'internal scratch']
  #allocation2 [shape = 'f32[16,32]{1,0:T(8,128)}', space=vmem, size = 0x2000, scoped, tag = 'scratch operand']
  %s0 = inlined_call_operand.hbm [shape: f32[8,64], index: 0, kind: input, shape index: {}]
  %s1 = inlined_call_operand.hbm [shape: f32[432,128], index: 1, kind: input, shape index: {}]
  %s2 = inlined_call_operand.hbm [shape: f32[16,128], index: 2, kind: output, shape index: {}]
  %s3 = sld [smem:[#allocation0]]
  $region26: #{tpu_custom_call.1} parent=0
    _
  %s5 = ssub.s32 1, %s3
  %s6 = scalar_select 0, %s5, %s3
  $region1: #{tpu_custom_call.1} parent=0
    #allocation3 [shape = 'u8[4096]{0}', space=vmem, size = 0x1000, scoped, tag = 'input window, operand 0, single buffered']
    #allocation4 [shape = 's32[1]{0}', space=sflag, size = 0x4, scoped, tag = 'scoped memory for tpu_custom_call.1']
    #allocation5 [shape = 's32[1]{0}', space=sflag, size = 0x4, scoped, tag = 'scoped memory for tpu_custom_call.1']
    #allocation6 [shape = 'u8[221184]{0}', space=vmem, size = 0x36000, scoped, tag = 'input window, operand 1, single buffered']
    #allocation7 [shape = 's32[1]{0}', space=sflag, size = 0x4, scoped, tag = 'scoped memory for tpu_custom_call.1']
    #allocation8 [shape = 'u8[8192]{0}', space=vmem, size = 0x2000, scoped, tag = 'output window, operand 0, single buffered']
    %7 = vsyncpa [#allocation4], 0
    %8 = vsyncpa [#allocation7], 0
    %9 = vsyncpa [#allocation5], 0
    // Predicated region
    $region2: #{tpu_custom_call.1} parent=1 // pred_check
      _
    $region3: #{tpu_custom_call.1} parent=1 // pred_check_branch
      %11 = sbr.rel (0) target = $region5
    $region4: #{tpu_custom_call.1} parent=1 // pred_region
      %13 = vsyncadd [#allocation4], 0
      %s15 = sshll.u32 %s0, 4
      %s16 = int_to_ptr.hbm [resolvable:$true] %s15
      %s17 = sshll.u32 [#allocation3], 4
      %s18 = int_to_ptr.vmem [resolvable:$true] %s17
      %20 = dma.hbm_to_vmem [thread:$0]  %s16, 128, %s18, [#allocation4]
    $region5: #{tpu_custom_call.1} parent=1 // pred_fallthru
      _
    // Predicated region
    $region6: #{tpu_custom_call.1} parent=1 // pred_check
      _
    $region7: #{tpu_custom_call.1} parent=1 // pred_check_branch
      %22 = sbr.rel (0) target = $region9
    $region8: #{tpu_custom_call.1} parent=1 // pred_region
      %24 = vsyncadd [#allocation7], 0
      %s25 = sshll.u32 %s1, 4
      %s26 = int_to_ptr.hbm [resolvable:$true] %s25
      %s27 = sshll.u32 [#allocation6], 4
      %s28 = int_to_ptr.vmem [resolvable:$true] %s27
      %33 = dma.hbm_to_vmem [thread:$0]  %s26, 6912, %s28, [#allocation7], 128, 128, 8
    $region9: #{tpu_custom_call.1} parent=1 // pred_fallthru
      _
    // Predicated region
    $region10: #{tpu_custom_call.1} parent=1 // pred_check
      _
    $region11: #{tpu_custom_call.1} parent=1 // pred_check_branch
      %35 = sbr.rel (0) target = $region13
    $region12: #{tpu_custom_call.1} parent=1 // pred_region
      %37 = dma.done [#allocation4], 128
    $region13: #{tpu_custom_call.1} parent=1 // pred_fallthru
      _
    // Predicated region
    $region14: #{tpu_custom_call.1} parent=1 // pred_check
      _
    $region15: #{tpu_custom_call.1} parent=1 // pred_check_branch
      %39 = sbr.rel (0) target = $region17
    $region16: #{tpu_custom_call.1} parent=1 // pred_region
      %41 = dma.done [#allocation7], 6912
    $region17: #{tpu_custom_call.1} parent=1 // pred_fallthru
      _
    %v43 = vld [vmem:[#allocation3] sm:$0xff]
    %v44 = vld [vmem:[#allocation6] sm:$0xff]
    %v45 = vld [vmem:[#allocation6 + $0x8] sm:$0xff]
    %v46 = vld [vmem:[#allocation6 + $0x10] sm:$0xff]
    %v47 = vld [vmem:[#allocation6 + $0x18] sm:$0xff]
    %v48 = vld [vmem:[#allocation6 + $0x20] sm:$0xff]
    %v49 = vld [vmem:[#allocation6 + $0x28] sm:$0xff]
    %v50 = vld [vmem:[#allocation6 + $0x30] sm:$0xff]
    %v51 = vld [vmem:[#allocation6 + $0x38] sm:$0xff]
    %v52 = vld [vmem:[#allocation6 + $0x60] sm:$0x1]
    %v53 = vperm.slane %v52, 0
    %vm54 = vcmask 523264
    %v56 = vsel %vm54, %v43, 0
    %58 = vmatpush.msra.mxu0 0.0
    %59 = vmatpush.msra.mxu0 0.0
    %60 = vmatpush.msra.mxu0 0.0
    %61 = vmatpush.msra.mxu0 0.0
    %62 = vmatpush.msra.mxu0 0.0
    %63 = vmatpush.msra.mxu0 0.0
    %64 = vmatpush.msra.mxu0 0.0
    %65 = vmatpush.msra.mxu0 0.0
    %v66 = vand.u32 %v51, 4294901760
    %67 = vmatpush.msra.mxu0 %v66
    %v68 = vand.u32 %v50, 4294901760
    %69 = vmatpush.msra.mxu0 %v68
    %v70 = vand.u32 %v49, 4294901760
    %71 = vmatpush.msra.mxu0 %v70
    %v72 = vand.u32 %v48, 4294901760
    %73 = vmatpush.msra.mxu0 %v72
    %v74 = vand.u32 %v47, 4294901760
    %75 = vmatpush.msra.mxu0 %v74
    %v76 = vand.u32 %v46, 4294901760
    %77 = vmatpush.msra.mxu0 %v76
    %v78 = vand.u32 %v45, 4294901760
    %79 = vmatpush.msra.mxu0 %v78
    %v80 = vand.u32 %v44, 4294901760
    %81 = vmatpush.msra.mxu0 %v80
    %v82 = vand.u32 %v56, 4294901760
    %v83 = vsub.f32 %v56, %v82
    %v84 = vand.u32 %v83, 4294901760
    %v85 = vsub.f32 %v83, %v84
    %v86 = vand.u32 %v85, 4294901760
    %87 = vmatmul.f32.gmra.mxu0 %v86
    %v88 = vpop.f32.mrf.mxu0
    %v89 = vadd.f32 %v53, %v88
    %90 = vdwg.mxu0
    %91 = vmatpush.msra.mxu0 0.0
    %92 = vmatpush.msra.mxu0 0.0
    %93 = vmatpush.msra.mxu0 0.0
    %94 = vmatpush.msra.mxu0 0.0
    %95 = vmatpush.msra.mxu0 0.0
    %96 = vmatpush.msra.mxu0 0.0
    %97 = vmatpush.msra.mxu0 0.0
    %98 = vmatpush.msra.mxu0 0.0
    %v99 = vand.u32 %v51, 4294901760
    %v100 = vsub.f32 %v51, %v99
    %v101 = vand.u32 %v100, 4294901760
    %v102 = vsub.f32 %v100, %v101
    %v103 = vand.u32 %v102, 4294901760
    %104 = vmatpush.msra.mxu0 %v103
    %v105 = vand.u32 %v50, 4294901760
    %v106 = vsub.f32 %v50, %v105
    %v107 = vand.u32 %v106, 4294901760
    %v108 = vsub.f32 %v106, %v107
    %v109 = vand.u32 %v108, 4294901760
    %110 = vmatpush.msra.mxu0 %v109
    %v111 = vand.u32 %v49, 4294901760
    %v112 = vsub.f32 %v49, %v111
    %v113 = vand.u32 %v112, 4294901760
    %v114 = vsub.f32 %v112, %v113
    %v115 = vand.u32 %v114, 4294901760
    %116 = vmatpush.msra.mxu0 %v115
    %v117 = vand.u32 %v48, 4294901760
    %v118 = vsub.f32 %v48, %v117
    %v119 = vand.u32 %v118, 4294901760
    %v120 = vsub.f32 %v118, %v119
    %v121 = vand.u32 %v120, 4294901760
    %122 = vmatpush.msra.mxu0 %v121
    %v123 = vand.u32 %v47, 4294901760
    %v124 = vsub.f32 %v47, %v123
    %v125 = vand.u32 %v124, 4294901760
    %v126 = vsub.f32 %v124, %v125
    %v127 = vand.u32 %v126, 4294901760
    %128 = vmatpush.msra.mxu0 %v127
    %v129 = vand.u32 %v46, 4294901760
    %v130 = vsub.f32 %v46, %v129
    %v131 = vand.u32 %v130, 4294901760
    %v132 = vsub.f32 %v130, %v131
    %v133 = vand.u32 %v132, 4294901760
    %134 = vmatpush.msra.mxu0 %v133
    %v135 = vand.u32 %v45, 4294901760
    %v136 = vsub.f32 %v45, %v135
    %v137 = vand.u32 %v136, 4294901760
    %v138 = vsub.f32 %v136, %v137
    %v139 = vand.u32 %v138, 4294901760
    %140 = vmatpush.msra.mxu0 %v139
    %v141 = vand.u32 %v44, 4294901760
    %v142 = vsub.f32 %v44, %v141
    %v143 = vand.u32 %v142, 4294901760
    %v144 = vsub.f32 %v142, %v143
    %v145 = vand.u32 %v144, 4294901760
    %146 = vmatpush.msra.mxu0 %v145
    %v147 = vand.u32 %v56, 4294901760
    %148 = vmatmul.f32.gmra.mxu0 %v147
    %v149 = vpop.f32.mrf.mxu0
    %v150 = vadd.f32 %v89, %v149
    %151 = vdwg.mxu0
    %152 = vmatpush.msra.mxu0 0.0
    %153 = vmatpush.msra.mxu0 0.0
    %154 = vmatpush.msra.mxu0 0.0
    %155 = vmatpush.msra.mxu0 0.0
    %156 = vmatpush.msra.mxu0 0.0
    %157 = vmatpush.msra.mxu0 0.0
    %158 = vmatpush.msra.mxu0 0.0
    %159 = vmatpush.msra.mxu0 0.0
    %v160 = vand.u32 %v51, 4294901760
    %v161 = vsub.f32 %v51, %v160
    %162 = vmatpush.msra.mxu0 %v161
    %v163 = vand.u32 %v50, 4294901760
    %v164 = vsub.f32 %v50, %v163
    %165 = vmatpush.msra.mxu0 %v164
    %v166 = vand.u32 %v49, 4294901760
    %v167 = vsub.f32 %v49, %v166
    %168 = vmatpush.msra.mxu0 %v167
    %v169 = vand.u32 %v48, 4294901760
    %v170 = vsub.f32 %v48, %v169
    %171 = vmatpush.msra.mxu0 %v170
    %v172 = vand.u32 %v47, 4294901760
    %v173 = vsub.f32 %v47, %v172
    %174 = vmatpush.msra.mxu0 %v173
    %v175 = vand.u32 %v46, 4294901760
    %v176 = vsub.f32 %v46, %v175
    %177 = vmatpush.msra.mxu0 %v176
    %v178 = vand.u32 %v45, 4294901760
    %v179 = vsub.f32 %v45, %v178
    %180 = vmatpush.msra.mxu0 %v179
    %v181 = vand.u32 %v44, 4294901760
    %v182 = vsub.f32 %v44, %v181
    %183 = vmatpush.msra.mxu0 %v182
    %v184 = vand.u32 %v56, 4294901760
    %v185 = vsub.f32 %v56, %v184
    %186 = vmatmul.f32.gmra.mxu0 %v185
    %v187 = vpop.f32.mrf.mxu0
    %v188 = vadd.f32 %v150, %v187
    %189 = vdwg.mxu0
    %190 = vmatpush.msra.mxu0 0.0
    %191 = vmatpush.msra.mxu0 0.0
    %192 = vmatpush.msra.mxu0 0.0
    %193 = vmatpush.msra.mxu0 0.0
    %194 = vmatpush.msra.mxu0 0.0
    %195 = vmatpush.msra.mxu0 0.0
    %196 = vmatpush.msra.mxu0 0.0
    %197 = vmatpush.msra.mxu0 0.0
    %v198 = vand.u32 %v51, 4294901760
    %199 = vmatpush.msra.mxu0 %v198
    %v200 = vand.u32 %v50, 4294901760
    %201 = vmatpush.msra.mxu0 %v200
    %v202 = vand.u32 %v49, 4294901760
    %203 = vmatpush.msra.mxu0 %v202
    %v204 = vand.u32 %v48, 4294901760
    %205 = vmatpush.msra.mxu0 %v204
    %v206 = vand.u32 %v47, 4294901760
    %207 = vmatpush.msra.mxu0 %v206
    %v208 = vand.u32 %v46, 4294901760
    %209 = vmatpush.msra.mxu0 %v208
    %v210 = vand.u32 %v45, 4294901760
    %211 = vmatpush.msra.mxu0 %v210
    %v212 = vand.u32 %v44, 4294901760
    %213 = vmatpush.msra.mxu0 %v212
    %v214 = vand.u32 %v56, 4294901760
    %v215 = vsub.f32 %v56, %v214
    %v216 = vand.u32 %v215, 4294901760
    %217 = vmatmul.f32.gmra.mxu0 %v216
    %v218 = vpop.f32.mrf.mxu0
    %v219 = vadd.f32 %v188, %v218
    %220 = vdwg.mxu0
    %221 = vmatpush.msra.mxu0 0.0
    %222 = vmatpush.msra.mxu0 0.0
    %223 = vmatpush.msra.mxu0 0.0
    %224 = vmatpush.msra.mxu0 0.0
    %225 = vmatpush.msra.mxu0 0.0
    %226 = vmatpush.msra.mxu0 0.0
    %227 = vmatpush.msra.mxu0 0.0
    %228 = vmatpush.msra.mxu0 0.0
    %v229 = vand.u32 %v51, 4294901760
    %v230 = vsub.f32 %v51, %v229
    %v231 = vand.u32 %v230, 4294901760
    %232 = vmatpush.msra.mxu0 %v231
    %v233 = vand.u32 %v50, 4294901760
    %v234 = vsub.f32 %v50, %v233
    %v235 = vand.u32 %v234, 4294901760
    %236 = vmatpush.msra.mxu0 %v235
    %v237 = vand.u32 %v49, 4294901760
    %v238 = vsub.f32 %v49, %v237
    %v239 = vand.u32 %v238, 4294901760
    %240 = vmatpush.msra.mxu0 %v239
    %v241 = vand.u32 %v48, 4294901760
    %v242 = vsub.f32 %v48, %v241
    %v243 = vand.u32 %v242, 4294901760
    %244 = vmatpush.msra.mxu0 %v243
    %v245 = vand.u32 %v47, 4294901760
    %v246 = vsub.f32 %v47, %v245
    %v247 = vand.u32 %v246, 4294901760
    %248 = vmatpush.msra.mxu0 %v247
    %v249 = vand.u32 %v46, 4294901760
    %v250 = vsub.f32 %v46, %v249
    %v251 = vand.u32 %v250, 4294901760
    %252 = vmatpush.msra.mxu0 %v251
    %v253 = vand.u32 %v45, 4294901760
    %v254 = vsub.f32 %v45, %v253
    %v255 = vand.u32 %v254, 4294901760
    %256 = vmatpush.msra.mxu0 %v255
    %v257 = vand.u32 %v44, 4294901760
    %v258 = vsub.f32 %v44, %v257
    %v259 = vand.u32 %v258, 4294901760
    %260 = vmatpush.msra.mxu0 %v259
    %v261 = vand.u32 %v56, 4294901760
    %262 = vmatmul.f32.gmra.mxu0 %v261
    %v263 = vpop.f32.mrf.mxu0
    %v264 = vadd.f32 %v219, %v263
    %265 = vdwg.mxu0
    %266 = vmatpush.msra.mxu0 0.0
    %267 = vmatpush.msra.mxu0 0.0
    %268 = vmatpush.msra.mxu0 0.0
    %269 = vmatpush.msra.mxu0 0.0
    %270 = vmatpush.msra.mxu0 0.0
    %271 = vmatpush.msra.mxu0 0.0
    %272 = vmatpush.msra.mxu0 0.0
    %273 = vmatpush.msra.mxu0 0.0
    %v274 = vand.u32 %v51, 4294901760
    %275 = vmatpush.msra.mxu0 %v274
    %v276 = vand.u32 %v50, 4294901760
    %277 = vmatpush.msra.mxu0 %v276
    %v278 = vand.u32 %v49, 4294901760
    %279 = vmatpush.msra.mxu0 %v278
    %v280 = vand.u32 %v48, 4294901760
    %281 = vmatpush.msra.mxu0 %v280
    %v282 = vand.u32 %v47, 4294901760
    %283 = vmatpush.msra.mxu0 %v282
    %v284 = vand.u32 %v46, 4294901760
    %285 = vmatpush.msra.mxu0 %v284
    %v286 = vand.u32 %v45, 4294901760
    %287 = vmatpush.msra.mxu0 %v286
    %v288 = vand.u32 %v44, 4294901760
    %289 = vmatpush.msra.mxu0 %v288
    %v290 = vand.u32 %v56, 4294901760
    %291 = vmatmul.f32.gmra.mxu0 %v290
    %v292 = vpop.f32.mrf.mxu0
    %v293 = vadd.f32 %v264, %v292
    %294 = vdwg.mxu0
    %v295 = vld [vmem:[#allocation6 + $0xb0] sm:$0xff]
    %v296 = vld [vmem:[#allocation6 + $0xb8] sm:$0xff]
    %v297 = vld [vmem:[#allocation6 + $0xc0] sm:$0xff]
    %v298 = vld [vmem:[#allocation6 + $0xc8] sm:$0xff]
    %v299 = vld [vmem:[#allocation6 + $0xd0] sm:$0xff]
    %v300 = vld [vmem:[#allocation6 + $0xd8] sm:$0xff]
    %v301 = vld [vmem:[#allocation6 + $0xe0] sm:$0xff]
    %v302 = vld [vmem:[#allocation6 + $0xe8] sm:$0xff]
    %v303 = vld [vmem:[#allocation6 + $0xf0] sm:$0x1]
    %v304 = vperm.slane %v303, 0
    %305 = vmatpush.msra.mxu0 0.0
    %306 = vmatpush.msra.mxu0 0.0
    %307 = vmatpush.msra.mxu0 0.0
    %308 = vmatpush.msra.mxu0 0.0
    %309 = vmatpush.msra.mxu0 0.0
    %310 = vmatpush.msra.mxu0 0.0
    %311 = vmatpush.msra.mxu0 0.0
    %312 = vmatpush.msra.mxu0 0.0
    %v313 = vand.u32 %v302, 4294901760
    %314 = vmatpush.msra.mxu0 %v313
    %v315 = vand.u32 %v301, 4294901760
    %316 = vmatpush.msra.mxu0 %v315
    %v317 = vand.u32 %v300, 4294901760
    %318 = vmatpush.msra.mxu0 %v317
    %v319 = vand.u32 %v299, 4294901760
    %320 = vmatpush.msra.mxu0 %v319
    %v321 = vand.u32 %v298, 4294901760
    %322 = vmatpush.msra.mxu0 %v321
    %v323 = vand.u32 %v297, 4294901760
    %324 = vmatpush.msra.mxu0 %v323
    %v325 = vand.u32 %v296, 4294901760
    %326 = vmatpush.msra.mxu0 %v325
    %v327 = vand.u32 %v295, 4294901760
    %328 = vmatpush.msra.mxu0 %v327
    %v329 = vand.u32 %v56, 4294901760
    %v330 = vsub.f32 %v56, %v329
    %v331 = vand.u32 %v330, 4294901760
    %v332 = vsub.f32 %v330, %v331
    %v333 = vand.u32 %v332, 4294901760
    %334 = vmatmul.f32.gmra.mxu0 %v333
    %v335 = vpop.f32.mrf.mxu0
    %v336 = vadd.f32 %v304, %v335
    %337 = vdwg.mxu0
    %338 = vmatpush.msra.mxu0 0.0
    %339 = vmatpush.msra.mxu0 0.0
    %340 = vmatpush.msra.mxu0 0.0
    %341 = vmatpush.msra.mxu0 0.0
    %342 = vmatpush.msra.mxu0 0.0
    %343 = vmatpush.msra.mxu0 0.0
    %344 = vmatpush.msra.mxu0 0.0
    %345 = vmatpush.msra.mxu0 0.0
    %v346 = vand.u32 %v302, 4294901760
    %v347 = vsub.f32 %v302, %v346
    %v348 = vand.u32 %v347, 4294901760
    %v349 = vsub.f32 %v347, %v348
    %v350 = vand.u32 %v349, 4294901760
    %351 = vmatpush.msra.mxu0 %v350
    %v352 = vand.u32 %v301, 4294901760
    %v353 = vsub.f32 %v301, %v352
    %v354 = vand.u32 %v353, 4294901760
    %v355 = vsub.f32 %v353, %v354
    %v356 = vand.u32 %v355, 4294901760
    %357 = vmatpush.msra.mxu0 %v356
    %v358 = vand.u32 %v300, 4294901760
    %v359 = vsub.f32 %v300, %v358
    %v360 = vand.u32 %v359, 4294901760
    %v361 = vsub.f32 %v359, %v360
    %v362 = vand.u32 %v361, 4294901760
    %363 = vmatpush.msra.mxu0 %v362
    %v364 = vand.u32 %v299, 4294901760
    %v365 = vsub.f32 %v299, %v364
    %v366 = vand.u32 %v365, 4294901760
    %v367 = vsub.f32 %v365, %v366
    %v368 = vand.u32 %v367, 4294901760
    %369 = vmatpush.msra.mxu0 %v368
    %v370 = vand.u32 %v298, 4294901760
    %v371 = vsub.f32 %v298, %v370
    %v372 = vand.u32 %v371, 4294901760
    %v373 = vsub.f32 %v371, %v372
    %v374 = vand.u32 %v373, 4294901760
    %375 = vmatpush.msra.mxu0 %v374
    %v376 = vand.u32 %v297, 4294901760
    %v377 = vsub.f32 %v297, %v376
    %v378 = vand.u32 %v377, 4294901760
    %v379 = vsub.f32 %v377, %v378
    %v380 = vand.u32 %v379, 4294901760
    %381 = vmatpush.msra.mxu0 %v380
    %v382 = vand.u32 %v296, 4294901760
    %v383 = vsub.f32 %v296, %v382
    %v384 = vand.u32 %v383, 4294901760
    %v385 = vsub.f32 %v383, %v384
    %v386 = vand.u32 %v385, 4294901760
    %387 = vmatpush.msra.mxu0 %v386
    %v388 = vand.u32 %v295, 4294901760
    %v389 = vsub.f32 %v295, %v388
    %v390 = vand.u32 %v389, 4294901760
    %v391 = vsub.f32 %v389, %v390
    %v392 = vand.u32 %v391, 4294901760
    %393 = vmatpush.msra.mxu0 %v392
    %v394 = vand.u32 %v56, 4294901760
    %395 = vmatmul.f32.gmra.mxu0 %v394
    %v396 = vpop.f32.mrf.mxu0
    %v397 = vadd.f32 %v336, %v396
    %398 = vdwg.mxu0
    %399 = vmatpush.msra.mxu0 0.0
    %400 = vmatpush.msra.mxu0 0.0
    %401 = vmatpush.msra.mxu0 0.0
    %402 = vmatpush.msra.mxu0 0.0
    %403 = vmatpush.msra.mxu0 0.0
    %404 = vmatpush.msra.mxu0 0.0
    %405 = vmatpush.msra.mxu0 0.0
    %406 = vmatpush.msra.mxu0 0.0
    %v407 = vand.u32 %v302, 4294901760
    %v408 = vsub.f32 %v302, %v407
    %409 = vmatpush.msra.mxu0 %v408
    %v410 = vand.u32 %v301, 4294901760
    %v411 = vsub.f32 %v301, %v410
    %412 = vmatpush.msra.mxu0 %v411
    %v413 = vand.u32 %v300, 4294901760
    %v414 = vsub.f32 %v300, %v413
    %415 = vmatpush.msra.mxu0 %v414
    %v416 = vand.u32 %v299, 4294901760
    %v417 = vsub.f32 %v299, %v416
    %418 = vmatpush.msra.mxu0 %v417
    %v419 = vand.u32 %v298, 4294901760
    %v420 = vsub.f32 %v298, %v419
    %421 = vmatpush.msra.mxu0 %v420
    %v422 = vand.u32 %v297, 4294901760
    %v423 = vsub.f32 %v297, %v422
    %424 = vmatpush.msra.mxu0 %v423
    %v425 = vand.u32 %v296, 4294901760
    %v426 = vsub.f32 %v296, %v425
    %427 = vmatpush.msra.mxu0 %v426
    %v428 = vand.u32 %v295, 4294901760
    %v429 = vsub.f32 %v295, %v428
    %430 = vmatpush.msra.mxu0 %v429
    %v431 = vand.u32 %v56, 4294901760
    %v432 = vsub.f32 %v56, %v431
    %433 = vmatmul.f32.gmra.mxu0 %v432
    %v434 = vpop.f32.mrf.mxu0
    %v435 = vadd.f32 %v397, %v434
    %436 = vdwg.mxu0
    %437 = vmatpush.msra.mxu0 0.0
    %438 = vmatpush.msra.mxu0 0.0
    %439 = vmatpush.msra.mxu0 0.0
    %440 = vmatpush.msra.mxu0 0.0
    %441 = vmatpush.msra.mxu0 0.0
    %442 = vmatpush.msra.mxu0 0.0
    %443 = vmatpush.msra.mxu0 0.0
    %444 = vmatpush.msra.mxu0 0.0
    %v445 = vand.u32 %v302, 4294901760
    %446 = vmatpush.msra.mxu0 %v445
    %v447 = vand.u32 %v301, 4294901760
    %448 = vmatpush.msra.mxu0 %v447
    %v449 = vand.u32 %v300, 4294901760
    %450 = vmatpush.msra.mxu0 %v449
    %v451 = vand.u32 %v299, 4294901760
    %452 = vmatpush.msra.mxu0 %v451
    %v453 = vand.u32 %v298, 4294901760
    %454 = vmatpush.msra.mxu0 %v453
    %v455 = vand.u32 %v297, 4294901760
    %456 = vmatpush.msra.mxu0 %v455
    %v457 = vand.u32 %v296, 4294901760
    %458 = vmatpush.msra.mxu0 %v457
    %v459 = vand.u32 %v295, 4294901760
    %460 = vmatpush.msra.mxu0 %v459
    %v461 = vand.u32 %v56, 4294901760
    %v462 = vsub.f32 %v56, %v461
    %v463 = vand.u32 %v462, 4294901760
    %464 = vmatmul.f32.gmra.mxu0 %v463
    %v465 = vpop.f32.mrf.mxu0
    %v466 = vadd.f32 %v435, %v465
    %467 = vdwg.mxu0
    %468 = vmatpush.msra.mxu0 0.0
    %469 = vmatpush.msra.mxu0 0.0
    %470 = vmatpush.msra.mxu0 0.0
    %471 = vmatpush.msra.mxu0 0.0
    %472 = vmatpush.msra.mxu0 0.0
    %473 = vmatpush.msra.mxu0 0.0
    %474 = vmatpush.msra.mxu0 0.0
    %475 = vmatpush.msra.mxu0 0.0
    %v476 = vand.u32 %v302, 4294901760
    %v477 = vsub.f32 %v302, %v476
    %v478 = vand.u32 %v477, 4294901760
    %479 = vmatpush.msra.mxu0 %v478
    %v480 = vand.u32 %v301, 4294901760
    %v481 = vsub.f32 %v301, %v480
    %v482 = vand.u32 %v481, 4294901760
    %483 = vmatpush.msra.mxu0 %v482
    %v484 = vand.u32 %v300, 4294901760
    %v485 = vsub.f32 %v300, %v484
    %v486 = vand.u32 %v485, 4294901760
    %487 = vmatpush.msra.mxu0 %v486
    %v488 = vand.u32 %v299, 4294901760
    %v489 = vsub.f32 %v299, %v488
    %v490 = vand.u32 %v489, 4294901760
    %491 = vmatpush.msra.mxu0 %v490
    %v492 = vand.u32 %v298, 4294901760
    %v493 = vsub.f32 %v298, %v492
    %v494 = vand.u32 %v493, 4294901760
    %495 = vmatpush.msra.mxu0 %v494
    %v496 = vand.u32 %v297, 4294901760
    %v497 = vsub.f32 %v297, %v496
    %v498 = vand.u32 %v497, 4294901760
    %499 = vmatpush.msra.mxu0 %v498
    %v500 = vand.u32 %v296, 4294901760
    %v501 = vsub.f32 %v296, %v500
    %v502 = vand.u32 %v501, 4294901760
    %503 = vmatpush.msra.mxu0 %v502
    %v504 = vand.u32 %v295, 4294901760
    %v505 = vsub.f32 %v295, %v504
    %v506 = vand.u32 %v505, 4294901760
    %507 = vmatpush.msra.mxu0 %v506
    %v508 = vand.u32 %v56, 4294901760
    %509 = vmatmul.f32.gmra.mxu0 %v508
    %v510 = vpop.f32.mrf.mxu0
    %v511 = vadd.f32 %v466, %v510
    %512 = vdwg.mxu0
    %513 = vmatpush.msra.mxu0 0.0
    %514 = vmatpush.msra.mxu0 0.0
    %515 = vmatpush.msra.mxu0 0.0
    %516 = vmatpush.msra.mxu0 0.0
    %517 = vmatpush.msra.mxu0 0.0
    %518 = vmatpush.msra.mxu0 0.0
    %519 = vmatpush.msra.mxu0 0.0
    %520 = vmatpush.msra.mxu0 0.0
    %v521 = vand.u32 %v302, 4294901760
    %522 = vmatpush.msra.mxu0 %v521
    %v523 = vand.u32 %v301, 4294901760
    %524 = vmatpush.msra.mxu0 %v523
    %v525 = vand.u32 %v300, 4294901760
    %526 = vmatpush.msra.mxu0 %v525
    %v527 = vand.u32 %v299, 4294901760
    %528 = vmatpush.msra.mxu0 %v527
    %v529 = vand.u32 %v298, 4294901760
    %530 = vmatpush.msra.mxu0 %v529
    %v531 = vand.u32 %v297, 4294901760
    %532 = vmatpush.msra.mxu0 %v531
    %v533 = vand.u32 %v296, 4294901760
    %534 = vmatpush.msra.mxu0 %v533
    %v535 = vand.u32 %v295, 4294901760
    %536 = vmatpush.msra.mxu0 %v535
    %v537 = vand.u32 %v56, 4294901760
    %538 = vmatmul.f32.gmra.mxu0 %v537
    %v539 = vpop.f32.mrf.mxu0
    %v540 = vadd.f32 %v511, %v539
    %541 = vdwg.mxu0
    %vm542 = vcmask 261120
    %543 = vst.msk [vmem:[#allocation2] sm:$0xff] %vm542, %v540
    %v544 = vld [vmem:[#allocation6 + $0x40] sm:$0xff]
    %v545 = vld [vmem:[#allocation6 + $0x48] sm:$0xff]
    %v546 = vld [vmem:[#allocation6 + $0x50] sm:$0xff]
    %v547 = vld [vmem:[#allocation6 + $0x58] sm:$0xff]
    %v548 = vpack.c.bf16 %v545, %v544
    %v549 = vpack.c.bf16 %v547, %v546
    %v550 = vld [vmem:[#allocation6 + $0x68] sm:$0xff]
    %v551 = vld [vmem:[#allocation6 + $0x70] sm:$0xff]
    %v552 = vld [vmem:[#allocation6 + $0x78] sm:$0xff]
    %v553 = vld [vmem:[#allocation6 + $0x80] sm:$0xff]
    %v554 = vpack.c.bf16 %v551, %v550
    %v555 = vpack.c.bf16 %v553, %v552
    %v556 = vld [vmem:[#allocation6 + $0x88] sm:$0xff]
    %v557 = vld [vmem:[#allocation6 + $0x90] sm:$0xff]
    %v558 = vld [vmem:[#allocation6 + $0x98] sm:$0xff]
    %v559 = vld [vmem:[#allocation6 + $0xa0] sm:$0xff]
    %v560 = vpack.c.bf16 %v557, %v556
    %v561 = vpack.c.bf16 %v559, %v558
    %v562 = vld [vmem:[#allocation6 + $0xa8] sm:$0x1]
    %v564 = vsel %vm542, 0, 0
    %566 = vmatpush.bf16.msra.mxu0 0
    %567 = vmatpush.bf16.msra.mxu0 0
    %568 = vmatpush.bf16.msra.mxu0 0
    %569 = vmatpush.bf16.msra.mxu0 0
    %570 = vmatpush.bf16.msra.mxu0 0
    %571 = vmatpush.bf16.msra.mxu0 0
    %572 = vmatpush.bf16.msra.mxu0 %v549
    %573 = vmatpush.bf16.msra.mxu0 %v548
    %574 = vmatmul.bf16.gmra.mxu0 %v564
    %v575 = vpop.f32.mrf.mxu0
    %v576 = vadd.f32 0.0, %v575
    %v577 = vpop.f32.mrf.mxu0
    %578 = vdwg.mxu0
    %v579 = vadd.f32 %v293, %v576
    %v580 = vxor.u32 %v579, 2147483648
    %v581 = vmul.f32 %v580, 1.442695
    %v582 = vpow.pop %v581
    %v583 = vadd.f32 %v582, 1.0
    %v584 = vrcp.pop %v583
    %v585 = vmul.f32 %v583, %v584
    %v586 = vsub.f32 1.0, %v585
    %v587 = vmul.f32 %v584, %v586
    %v588 = vadd.f32 %v584, %v587
    %vm589 = vweird.f32 %v583
    %vm590 = vweird.f32 %v584
    %vm591 = vmor %vm589, %vm590
    %v592 = vsel %vm591, %v584, %v588
    %v593 = vand.u32 2147483647, %v583
    %vm594 = vcmp.eq.f32.partialorder %v593, 8.507059e+37
    %v595 = vand.u32 %v583, 2147483648
    %v596 = vor.u32 1.1754944e-38, %v595
    %v597 = vsel %vm594, %v596, %v592
    %v598 = vmul.f32 1.0, %v597
    %v599 = vtanh.pop %v579
    %v600 = vmul.f32 %v598, 0.0
    %602 = vrot.lane.b32.xlu0 %v599, 64
    %v603 = vpop.permute.xlu0 %602
    %v605 = vmul.f32 %v598, %v603
    %607 = vrot.lane.b32.xlu0 %v605, 32
    %v608 = vpop.permute.xlu0 %607
    %v610 = vadd.f32 %v600, %v608
    %v611 = vtanh.pop %v610
    %613 = vrot.lane.b32.xlu0 %v611, 64
    %v614 = vpop.permute.xlu0 %613
    %v616 = vmul.f32 %v598, %v614
    %v617 = vpack.c.bf16 %v616, %v616
    %618 = vmatpush.bf16.msra.mxu0 0
    %619 = vmatpush.bf16.msra.mxu0 0
    %620 = vmatpush.bf16.msra.mxu0 0
    %621 = vmatpush.bf16.msra.mxu0 0
    %622 = vmatpush.bf16.msra.mxu0 0
    %623 = vmatpush.bf16.msra.mxu0 0
    %624 = vmatpush.bf16.msra.mxu0 %v561
    %625 = vmatpush.bf16.msra.mxu0 %v560
    %626 = vmatmul.bf16.gmra.mxu0 %v564
    %v627 = vpop.f32.mrf.mxu0
    %v628 = vadd.f32 0.0, %v627
    %v629 = vpop.f32.mrf.mxu0
    %630 = vdwg.mxu0
    %632 = vrot.lane.b32.xlu0 %v617, 32
    %v633 = vpop.permute.xlu0 %632
    %v635 = vsel %vm542, %v633, 0
    %637 = vmatpush.bf16.msra.mxu0 0
    %638 = vmatpush.bf16.msra.mxu0 0
    %639 = vmatpush.bf16.msra.mxu0 0
    %640 = vmatpush.bf16.msra.mxu0 0
    %641 = vmatpush.bf16.msra.mxu0 0
    %642 = vmatpush.bf16.msra.mxu0 0
    %643 = vmatpush.bf16.msra.mxu0 %v555
    %644 = vmatpush.bf16.msra.mxu0 %v554
    %645 = vmatmul.bf16.gmra.mxu0 %v635
    %v646 = vpop.f32.mrf.mxu0
    %v647 = vadd.f32 %v628, %v646
    %v648 = vpop.f32.mrf.mxu0
    %649 = vdwg.mxu0
    %v650 = vadd.f32 %v647, %v562
    %v651 = vxor.u32 %v650, 2147483648
    %v652 = vmul.f32 %v651, 1.442695
    %v653 = vpow.pop %v652
    %v654 = vadd.f32 %v653, 1.0
    %v655 = vrcp.pop %v654
    %v656 = vmul.f32 %v654, %v655
    %v657 = vsub.f32 1.0, %v656
    %v658 = vmul.f32 %v655, %v657
    %v659 = vadd.f32 %v655, %v658
    %vm660 = vweird.f32 %v654
    %vm661 = vweird.f32 %v655
    %vm662 = vmor %vm660, %vm661
    %v663 = vsel %vm662, %v655, %v659
    %v664 = vand.u32 2147483647, %v654
    %vm665 = vcmp.eq.f32.partialorder %v664, 8.507059e+37
    %v666 = vand.u32 %v654, 2147483648
    %v667 = vor.u32 1.1754944e-38, %v666
    %v668 = vsel %vm665, %v667, %v663
    %v669 = vmul.f32 1.0, %v668
    %v670 = vtanh.pop %v650
    %v671 = vmul.f32 %v669, 0.0
    %673 = vrot.lane.b32.xlu0 %v670, 64
    %v674 = vpop.permute.xlu0 %673
    %v676 = vmul.f32 %v669, %v674
    %678 = vrot.lane.b32.xlu0 %v676, 32
    %v679 = vpop.permute.xlu0 %678
    %v681 = vadd.f32 %v671, %v679
    %v682 = vtanh.pop %v681
    %684 = vrot.lane.b32.xlu0 %v682, 64
    %v685 = vpop.permute.xlu0 %684
    %v687 = vmul.f32 %v669, %v685
    %689 = vrot.lane.b32.xlu0 %v687, 32
    %v690 = vpop.permute.xlu0 %689
    %vm692 = vcmask 253952
    %693 = vst.msk [vmem:[#allocation2 + $0x8] sm:$0x1] %vm692, %v690
    %694 = vmatpush.bf16.msra.mxu0 0
    %695 = vmatpush.bf16.msra.mxu0 0
    %696 = vmatpush.bf16.msra.mxu0 0
    %697 = vmatpush.bf16.msra.mxu0 0
    %698 = vmatpush.bf16.msra.mxu0 0
    %699 = vmatpush.bf16.msra.mxu0 0
    %700 = vmatpush.bf16.msra.mxu0 %v549
    %701 = vmatpush.bf16.msra.mxu0 %v548
    %702 = vmatmul.bf16.gmra.mxu0 %v635
    %v703 = vpop.f32.mrf.mxu0
    %v704 = vadd.f32 0.0, %v703
    %v705 = vpop.f32.mrf.mxu0
    %706 = vdwg.mxu0
    %v708 = vrot.slane %v704, 7
    %v710 = vadd.f32 %v293, %v708
    %v711 = vxor.u32 %v710, 2147483648
    %v712 = vmul.f32 %v711, 1.442695
    %v713 = vpow.pop %v712
    %v714 = vadd.f32 %v713, 1.0
    %v715 = vrcp.pop %v714
    %v716 = vmul.f32 %v714, %v715
    %v717 = vsub.f32 1.0, %v716
    %v718 = vmul.f32 %v715, %v717
    %v719 = vadd.f32 %v715, %v718
    %vm720 = vweird.f32 %v714
    %vm721 = vweird.f32 %v715
    %vm722 = vmor %vm720, %vm721
    %v723 = vsel %vm722, %v715, %v719
    %v724 = vand.u32 2147483647, %v714
    %vm725 = vcmp.eq.f32.partialorder %v724, 8.507059e+37
    %v726 = vand.u32 %v714, 2147483648
    %v727 = vor.u32 1.1754944e-38, %v726
    %v728 = vsel %vm725, %v727, %v723
    %v729 = vmul.f32 1.0, %v728
    %v730 = vtanh.pop %v710
    %v732 = vrot.slane %v610, 7
    %v734 = vmul.f32 %v729, %v732
    %736 = vrot.lane.b32.xlu0 %v730, 64
    %v737 = vpop.permute.xlu0 %736
    %v739 = vmul.f32 %v729, %v737
    %741 = vrot.lane.b32.xlu0 %v739, 32
    %v742 = vpop.permute.xlu0 %741
    %v744 = vadd.f32 %v734, %v742
    %v745 = vtanh.pop %v744
    %747 = vrot.lane.b32.xlu0 %v745, 64
    %v748 = vpop.permute.xlu0 %747
    %v750 = vmul.f32 %v729, %v748
    %v751 = vpack.c.bf16 %v750, %v750
    %v752 = vpack.c.bf16 %v687, %v687
    %754 = vrot.lane.b32.xlu0 %v752, 32
    %v755 = vpop.permute.xlu0 %754
    %v757 = vsel %vm542, %v755, 0
    %759 = vmatpush.bf16.msra.mxu0 0
    %760 = vmatpush.bf16.msra.mxu0 0
    %761 = vmatpush.bf16.msra.mxu0 0
    %762 = vmatpush.bf16.msra.mxu0 0
    %763 = vmatpush.bf16.msra.mxu0 0
    %764 = vmatpush.bf16.msra.mxu0 0
    %765 = vmatpush.bf16.msra.mxu0 %v561
    %766 = vmatpush.bf16.msra.mxu0 %v560
    %767 = vmatmul.bf16.gmra.mxu0 %v757
    %v768 = vpop.f32.mrf.mxu0
    %v769 = vadd.f32 0.0, %v768
    %v770 = vpop.f32.mrf.mxu0
    %771 = vdwg.mxu0
    %v773 = vshrl.u32 %v751, 16
    %775 = vrot.lane.b32.xlu0 %v773, 32
    %v776 = vpop.permute.xlu0 %775
    %v778 = vsel %vm542, %v776, 0
    %780 = vmatpush.bf16.msra.mxu0 0
    %781 = vmatpush.bf16.msra.mxu0 0
    %782 = vmatpush.bf16.msra.mxu0 0
    %783 = vmatpush.bf16.msra.mxu0 0
    %784 = vmatpush.bf16.msra.mxu0 0
    %785 = vmatpush.bf16.msra.mxu0 0
    %786 = vmatpush.bf16.msra.mxu0 %v555
    %787 = vmatpush.bf16.msra.mxu0 %v554
    %788 = vmatmul.bf16.gmra.mxu0 %v778
    %v789 = vpop.f32.mrf.mxu0
    %v790 = vadd.f32 %v769, %v789
    %v791 = vpop.f32.mrf.mxu0
    %792 = vdwg.mxu0
    %v793 = vadd.f32 %v790, %v562
    %v794 = vxor.u32 %v793, 2147483648
    %v795 = vmul.f32 %v794, 1.442695
    %v796 = vpow.pop %v795
    %v797 = vadd.f32 %v796, 1.0
    %v798 = vrcp.pop %v797
    %v799 = vmul.f32 %v797, %v798
    %v800 = vsub.f32 1.0, %v799
    %v801 = vmul.f32 %v798, %v800
    %v802 = vadd.f32 %v798, %v801
    %vm803 = vweird.f32 %v797
    %vm804 = vweird.f32 %v798
    %vm805 = vmor %vm803, %vm804
    %v806 = vsel %vm805, %v798, %v802
    %v807 = vand.u32 2147483647, %v797
    %vm808 = vcmp.eq.f32.partialorder %v807, 8.507059e+37
    %v809 = vand.u32 %v797, 2147483648
    %v810 = vor.u32 1.1754944e-38, %v809
    %v811 = vsel %vm808, %v810, %v806
    %v812 = vmul.f32 1.0, %v811
    %v813 = vtanh.pop %v793
    %v814 = vmul.f32 %v812, %v681
    %816 = vrot.lane.b32.xlu0 %v813, 64
    %v817 = vpop.permute.xlu0 %816
    %v819 = vmul.f32 %v812, %v817
    %821 = vrot.lane.b32.xlu0 %v819, 32
    %v822 = vpop.permute.xlu0 %821
    %v824 = vadd.f32 %v814, %v822
    %v825 = vtanh.pop %v824
    %827 = vrot.lane.b32.xlu0 %v825, 64
    %v828 = vpop.permute.xlu0 %827
    %v830 = vmul.f32 %v812, %v828
    %832 = vrot.lane.b32.xlu0 %v830, 32
    %v833 = vpop.permute.xlu0 %832
    %835 = vst.msk [vmem:[#allocation2 + $0x9] sm:$0x1] %vm692, %v833
    %836 = vmatpush.bf16.msra.mxu0 0
    %837 = vmatpush.bf16.msra.mxu0 0
    %838 = vmatpush.bf16.msra.mxu0 0
    %839 = vmatpush.bf16.msra.mxu0 0
    %840 = vmatpush.bf16.msra.mxu0 0
    %841 = vmatpush.bf16.msra.mxu0 0
    %842 = vmatpush.bf16.msra.mxu0 %v549
    %843 = vmatpush.bf16.msra.mxu0 %v548
    %844 = vmatmul.bf16.gmra.mxu0 %v778
    %v845 = vpop.f32.mrf.mxu0
    %v846 = vadd.f32 0.0, %v845
    %v847 = vpop.f32.mrf.mxu0
    %848 = vdwg.mxu0
    %v850 = vrot.slane %v846, 6
    %v852 = vadd.f32 %v293, %v850
    %v853 = vxor.u32 %v852, 2147483648
    %v854 = vmul.f32 %v853, 1.442695
    %v855 = vpow.pop %v854
    %v856 = vadd.f32 %v855, 1.0
    %v857 = vrcp.pop %v856
    %v858 = vmul.f32 %v856, %v857
    %v859 = vsub.f32 1.0, %v858
    %v860 = vmul.f32 %v857, %v859
    %v861 = vadd.f32 %v857, %v860
    %vm862 = vweird.f32 %v856
    %vm863 = vweird.f32 %v857
    %vm864 = vmor %vm862, %vm863
    %v865 = vsel %vm864, %v857, %v861
    %v866 = vand.u32 2147483647, %v856
    %vm867 = vcmp.eq.f32.partialorder %v866, 8.507059e+37
    %v868 = vand.u32 %v856, 2147483648
    %v869 = vor.u32 1.1754944e-38, %v868
    %v870 = vsel %vm867, %v869, %v865
    %v871 = vmul.f32 1.0, %v870
    %v872 = vtanh.pop %v852
    %v874 = vrot.slane %v744, 7
    %v876 = vmul.f32 %v871, %v874
    %878 = vrot.lane.b32.xlu0 %v872, 64
    %v879 = vpop.permute.xlu0 %878
    %v881 = vmul.f32 %v871, %v879
    %883 = vrot.lane.b32.xlu0 %v881, 32
    %v884 = vpop.permute.xlu0 %883
    %v886 = vadd.f32 %v876, %v884
    %v887 = vtanh.pop %v886
    %889 = vrot.lane.b32.xlu0 %v887, 64
    %v890 = vpop.permute.xlu0 %889
    %v892 = vmul.f32 %v871, %v890
    %v893 = vpack.c.bf16 %v892, %v892
    %v894 = vpack.c.bf16 %v830, %v830
    %896 = vrot.lane.b32.xlu0 %v894, 32
    %v897 = vpop.permute.xlu0 %896
    %v899 = vsel %vm542, %v897, 0
    %901 = vmatpush.bf16.msra.mxu0 0
    %902 = vmatpush.bf16.msra.mxu0 0
    %903 = vmatpush.bf16.msra.mxu0 0
    %904 = vmatpush.bf16.msra.mxu0 0
    %905 = vmatpush.bf16.msra.mxu0 0
    %906 = vmatpush.bf16.msra.mxu0 0
    %907 = vmatpush.bf16.msra.mxu0 %v561
    %908 = vmatpush.bf16.msra.mxu0 %v560
    %909 = vmatmul.bf16.gmra.mxu0 %v899
    %v910 = vpop.f32.mrf.mxu0
    %v911 = vadd.f32 0.0, %v910
    %v912 = vpop.f32.mrf.mxu0
    %913 = vdwg.mxu0
    %v915 = vrot.slane %v893, 1
    %916 = vrot.lane.b32.xlu0 %v915, 32
    %v917 = vpop.permute.xlu0 %916
    %v919 = vsel %vm542, %v917, 0
    %921 = vmatpush.bf16.msra.mxu0 0
    %922 = vmatpush.bf16.msra.mxu0 0
    %923 = vmatpush.bf16.msra.mxu0 0
    %924 = vmatpush.bf16.msra.mxu0 0
    %925 = vmatpush.bf16.msra.mxu0 0
    %926 = vmatpush.bf16.msra.mxu0 0
    %927 = vmatpush.bf16.msra.mxu0 %v555
    %928 = vmatpush.bf16.msra.mxu0 %v554
    %929 = vmatmul.bf16.gmra.mxu0 %v919
    %v930 = vpop.f32.mrf.mxu0
    %v931 = vadd.f32 %v911, %v930
    %v932 = vpop.f32.mrf.mxu0
    %933 = vdwg.mxu0
    %v934 = vadd.f32 %v931, %v562
    %v935 = vxor.u32 %v934, 2147483648
    %v936 = vmul.f32 %v935, 1.442695
    %v937 = vpow.pop %v936
    %v938 = vadd.f32 %v937, 1.0
    %v939 = vrcp.pop %v938
    %v940 = vmul.f32 %v938, %v939
    %v941 = vsub.f32 1.0, %v940
    %v942 = vmul.f32 %v939, %v941
    %v943 = vadd.f32 %v939, %v942
    %vm944 = vweird.f32 %v938
    %vm945 = vweird.f32 %v939
    %vm946 = vmor %vm944, %vm945
    %v947 = vsel %vm946, %v939, %v943
    %v948 = vand.u32 2147483647, %v938
    %vm949 = vcmp.eq.f32.partialorder %v948, 8.507059e+37
    %v950 = vand.u32 %v938, 2147483648
    %v951 = vor.u32 1.1754944e-38, %v950
    %v952 = vsel %vm949, %v951, %v947
    %v953 = vmul.f32 1.0, %v952
    %v954 = vtanh.pop %v934
    %v955 = vmul.f32 %v953, %v824
    %957 = vrot.lane.b32.xlu0 %v954, 64
    %v958 = vpop.permute.xlu0 %957
    %v960 = vmul.f32 %v953, %v958
    %962 = vrot.lane.b32.xlu0 %v960, 32
    %v963 = vpop.permute.xlu0 %962
    %v965 = vadd.f32 %v955, %v963
    %v966 = vtanh.pop %v965
    %968 = vrot.lane.b32.xlu0 %v966, 64
    %v969 = vpop.permute.xlu0 %968
    %v971 = vmul.f32 %v953, %v969
    %973 = vrot.lane.b32.xlu0 %v971, 32
    %v974 = vpop.permute.xlu0 %973
    %976 = vst.msk [vmem:[#allocation2 + $0xa] sm:$0x1] %vm692, %v974
    %977 = vmatpush.bf16.msra.mxu0 0
    %978 = vmatpush.bf16.msra.mxu0 0
    %979 = vmatpush.bf16.msra.mxu0 0
    %980 = vmatpush.bf16.msra.mxu0 0
    %981 = vmatpush.bf16.msra.mxu0 0
    %982 = vmatpush.bf16.msra.mxu0 0
    %983 = vmatpush.bf16.msra.mxu0 %v549
    %984 = vmatpush.bf16.msra.mxu0 %v548
    %985 = vmatmul.bf16.gmra.mxu0 %v919
    %v986 = vpop.f32.mrf.mxu0
    %v987 = vadd.f32 0.0, %v986
    %v988 = vpop.f32.mrf.mxu0
    %989 = vdwg.mxu0
    %v991 = vrot.slane %v987, 5
    %v993 = vadd.f32 %v293, %v991
    %v994 = vxor.u32 %v993, 2147483648
    %v995 = vmul.f32 %v994, 1.442695
    %v996 = vpow.pop %v995
    %v997 = vadd.f32 %v996, 1.0
    %v998 = vrcp.pop %v997
    %v999 = vmul.f32 %v997, %v998
    %v1000 = vsub.f32 1.0, %v999
    %v1001 = vmul.f32 %v998, %v1000
    %v1002 = vadd.f32 %v998, %v1001
    %vm1003 = vweird.f32 %v997
    %vm1004 = vweird.f32 %v998
    %vm1005 = vmor %vm1003, %vm1004
    %v1006 = vsel %vm1005, %v998, %v1002
    %v1007 = vand.u32 2147483647, %v997
    %vm1008 = vcmp.eq.f32.partialorder %v1007, 8.507059e+37
    %v1009 = vand.u32 %v997, 2147483648
    %v1010 = vor.u32 1.1754944e-38, %v1009
    %v1011 = vsel %vm1008, %v1010, %v1006
    %v1012 = vmul.f32 1.0, %v1011
    %v1013 = vtanh.pop %v993
    %v1015 = vrot.slane %v886, 7
    %v1017 = vmul.f32 %v1012, %v1015
    %1019 = vrot.lane.b32.xlu0 %v1013, 64
    %v1020 = vpop.permute.xlu0 %1019
    %v1022 = vmul.f32 %v1012, %v1020
    %1024 = vrot.lane.b32.xlu0 %v1022, 32
    %v1025 = vpop.permute.xlu0 %1024
    %v1027 = vadd.f32 %v1017, %v1025
    %v1028 = vtanh.pop %v1027
    %1030 = vrot.lane.b32.xlu0 %v1028, 64
    %v1031 = vpop.permute.xlu0 %1030
    %v1033 = vmul.f32 %v1012, %v1031
    %v1034 = vpack.c.bf16 %v1033, %v1033
    %v1035 = vpack.c.bf16 %v971, %v971
    %1037 = vrot.lane.b32.xlu0 %v1035, 32
    %v1038 = vpop.permute.xlu0 %1037
    %v1040 = vsel %vm542, %v1038, 0
    %1042 = vmatpush.bf16.msra.mxu0 0
    %1043 = vmatpush.bf16.msra.mxu0 0
    %1044 = vmatpush.bf16.msra.mxu0 0
    %1045 = vmatpush.bf16.msra.mxu0 0
    %1046 = vmatpush.bf16.msra.mxu0 0
    %1047 = vmatpush.bf16.msra.mxu0 0
    %1048 = vmatpush.bf16.msra.mxu0 %v561
    %1049 = vmatpush.bf16.msra.mxu0 %v560
    %1050 = vmatmul.bf16.gmra.mxu0 %v1040
    %v1051 = vpop.f32.mrf.mxu0
    %v1052 = vadd.f32 0.0, %v1051
    %v1053 = vpop.f32.mrf.mxu0
    %1054 = vdwg.mxu0
    %v1056 = vshrl.u32 %v1034, 16
    %v1058 = vrot.slane %v1056, 1
    %1059 = vrot.lane.b32.xlu0 %v1058, 32
    %v1060 = vpop.permute.xlu0 %1059
    %v1062 = vsel %vm542, %v1060, 0
    %1064 = vmatpush.bf16.msra.mxu0 0
    %1065 = vmatpush.bf16.msra.mxu0 0
    %1066 = vmatpush.bf16.msra.mxu0 0
    %1067 = vmatpush.bf16.msra.mxu0 0
    %1068 = vmatpush.bf16.msra.mxu0 0
    %1069 = vmatpush.bf16.msra.mxu0 0
    %1070 = vmatpush.bf16.msra.mxu0 %v555
    %1071 = vmatpush.bf16.msra.mxu0 %v554
    %1072 = vmatmul.bf16.gmra.mxu0 %v1062
    %v1073 = vpop.f32.mrf.mxu0
    %v1074 = vadd.f32 %v1052, %v1073
    %v1075 = vpop.f32.mrf.mxu0
    %1076 = vdwg.mxu0
    %v1077 = vadd.f32 %v1074, %v562
    %v1078 = vxor.u32 %v1077, 2147483648
    %v1079 = vmul.f32 %v1078, 1.442695
    %v1080 = vpow.pop %v1079
    %v1081 = vadd.f32 %v1080, 1.0
    %v1082 = vrcp.pop %v1081
    %v1083 = vmul.f32 %v1081, %v1082
    %v1084 = vsub.f32 1.0, %v1083
    %v1085 = vmul.f32 %v1082, %v1084
    %v1086 = vadd.f32 %v1082, %v1085
    %vm1087 = vweird.f32 %v1081
    %vm1088 = vweird.f32 %v1082
    %vm1089 = vmor %vm1087, %vm1088
    %v1090 = vsel %vm1089, %v1082, %v1086
    %v1091 = vand.u32 2147483647, %v1081
    %vm1092 = vcmp.eq.f32.partialorder %v1091, 8.507059e+37
    %v1093 = vand.u32 %v1081, 2147483648
    %v1094 = vor.u32 1.1754944e-38, %v1093
    %v1095 = vsel %vm1092, %v1094, %v1090
    %v1096 = vmul.f32 1.0, %v1095
    %v1097 = vtanh.pop %v1077
    %v1098 = vmul.f32 %v1096, %v965
    %1100 = vrot.lane.b32.xlu0 %v1097, 64
    %v1101 = vpop.permute.xlu0 %1100
    %v1103 = vmul.f32 %v1096, %v1101
    %1105 = vrot.lane.b32.xlu0 %v1103, 32
    %v1106 = vpop.permute.xlu0 %1105
    %v1108 = vadd.f32 %v1098, %v1106
    %v1109 = vtanh.pop %v1108
    %1111 = vrot.lane.b32.xlu0 %v1109, 64
    %v1112 = vpop.permute.xlu0 %1111
    %v1114 = vmul.f32 %v1096, %v1112
    %1116 = vrot.lane.b32.xlu0 %v1114, 32
    %v1117 = vpop.permute.xlu0 %1116
    %1119 = vst.msk [vmem:[#allocation2 + $0xb] sm:$0x1] %vm692, %v1117
    %1120 = vmatpush.bf16.msra.mxu0 0
    %1121 = vmatpush.bf16.msra.mxu0 0
    %1122 = vmatpush.bf16.msra.mxu0 0
    %1123 = vmatpush.bf16.msra.mxu0 0
    %1124 = vmatpush.bf16.msra.mxu0 0
    %1125 = vmatpush.bf16.msra.mxu0 0
    %1126 = vmatpush.bf16.msra.mxu0 %v549
    %1127 = vmatpush.bf16.msra.mxu0 %v548
    %1128 = vmatmul.bf16.gmra.mxu0 %v1062
    %v1129 = vpop.f32.mrf.mxu0
    %v1130 = vadd.f32 0.0, %v1129
    %v1131 = vpop.f32.mrf.mxu0
    %1132 = vdwg.mxu0
    %v1134 = vrot.slane %v1130, 4
    %v1136 = vadd.f32 %v293, %v1134
    %v1137 = vxor.u32 %v1136, 2147483648
    %v1138 = vmul.f32 %v1137, 1.442695
    %v1139 = vpow.pop %v1138
    %v1140 = vadd.f32 %v1139, 1.0
    %v1141 = vrcp.pop %v1140
    %v1142 = vmul.f32 %v1140, %v1141
    %v1143 = vsub.f32 1.0, %v1142
    %v1144 = vmul.f32 %v1141, %v1143
    %v1145 = vadd.f32 %v1141, %v1144
    %vm1146 = vweird.f32 %v1140
    %vm1147 = vweird.f32 %v1141
    %vm1148 = vmor %vm1146, %vm1147
    %v1149 = vsel %vm1148, %v1141, %v1145
    %v1150 = vand.u32 2147483647, %v1140
    %vm1151 = vcmp.eq.f32.partialorder %v1150, 8.507059e+37
    %v1152 = vand.u32 %v1140, 2147483648
    %v1153 = vor.u32 1.1754944e-38, %v1152
    %v1154 = vsel %vm1151, %v1153, %v1149
    %v1155 = vmul.f32 1.0, %v1154
    %v1156 = vtanh.pop %v1136
    %v1158 = vrot.slane %v1027, 7
    %v1160 = vmul.f32 %v1155, %v1158
    %1162 = vrot.lane.b32.xlu0 %v1156, 64
    %v1163 = vpop.permute.xlu0 %1162
    %v1165 = vmul.f32 %v1155, %v1163
    %1167 = vrot.lane.b32.xlu0 %v1165, 32
    %v1168 = vpop.permute.xlu0 %1167
    %v1170 = vadd.f32 %v1160, %v1168
    %v1171 = vtanh.pop %v1170
    %1173 = vrot.lane.b32.xlu0 %v1171, 64
    %v1174 = vpop.permute.xlu0 %1173
    %v1176 = vmul.f32 %v1155, %v1174
    %v1177 = vpack.c.bf16 %v1176, %v1176
    %v1178 = vpack.c.bf16 %v1114, %v1114
    %1180 = vrot.lane.b32.xlu0 %v1178, 32
    %v1181 = vpop.permute.xlu0 %1180
    %v1183 = vsel %vm542, %v1181, 0
    %1185 = vmatpush.bf16.msra.mxu0 0
    %1186 = vmatpush.bf16.msra.mxu0 0
    %1187 = vmatpush.bf16.msra.mxu0 0
    %1188 = vmatpush.bf16.msra.mxu0 0
    %1189 = vmatpush.bf16.msra.mxu0 0
    %1190 = vmatpush.bf16.msra.mxu0 0
    %1191 = vmatpush.bf16.msra.mxu0 %v561
    %1192 = vmatpush.bf16.msra.mxu0 %v560
    %1193 = vmatmul.bf16.gmra.mxu0 %v1183
    %v1194 = vpop.f32.mrf.mxu0
    %v1195 = vadd.f32 0.0, %v1194
    %v1196 = vpop.f32.mrf.mxu0
    %1197 = vdwg.mxu0
    %v1199 = vrot.slane %v1177, 2
    %1200 = vrot.lane.b32.xlu0 %v1199, 32
    %v1201 = vpop.permute.xlu0 %1200
    %v1203 = vsel %vm542, %v1201, 0
    %1205 = vmatpush.bf16.msra.mxu0 0
    %1206 = vmatpush.bf16.msra.mxu0 0
    %1207 = vmatpush.bf16.msra.mxu0 0
    %1208 = vmatpush.bf16.msra.mxu0 0
    %1209 = vmatpush.bf16.msra.mxu0 0
    %1210 = vmatpush.bf16.msra.mxu0 0
    %1211 = vmatpush.bf16.msra.mxu0 %v555
    %1212 = vmatpush.bf16.msra.mxu0 %v554
    %1213 = vmatmul.bf16.gmra.mxu0 %v1203
    %v1214 = vpop.f32.mrf.mxu0
    %v1215 = vadd.f32 %v1195, %v1214
    %v1216 = vpop.f32.mrf.mxu0
    %1217 = vdwg.mxu0
    %v1218 = vadd.f32 %v1215, %v562
    %v1219 = vxor.u32 %v1218, 2147483648
    %v1220 = vmul.f32 %v1219, 1.442695
    %v1221 = vpow.pop %v1220
    %v1222 = vadd.f32 %v1221, 1.0
    %v1223 = vrcp.pop %v1222
    %v1224 = vmul.f32 %v1222, %v1223
    %v1225 = vsub.f32 1.0, %v1224
    %v1226 = vmul.f32 %v1223, %v1225
    %v1227 = vadd.f32 %v1223, %v1226
    %vm1228 = vweird.f32 %v1222
    %vm1229 = vweird.f32 %v1223
    %vm1230 = vmor %vm1228, %vm1229
    %v1231 = vsel %vm1230, %v1223, %v1227
    %v1232 = vand.u32 2147483647, %v1222
    %vm1233 = vcmp.eq.f32.partialorder %v1232, 8.507059e+37
    %v1234 = vand.u32 %v1222, 2147483648
    %v1235 = vor.u32 1.1754944e-38, %v1234
    %v1236 = vsel %vm1233, %v1235, %v1231
    %v1237 = vmul.f32 1.0, %v1236
    %v1238 = vtanh.pop %v1218
    %v1239 = vmul.f32 %v1237, %v1108
    %1241 = vrot.lane.b32.xlu0 %v1238, 64
    %v1242 = vpop.permute.xlu0 %1241
    %v1244 = vmul.f32 %v1237, %v1242
    %1246 = vrot.lane.b32.xlu0 %v1244, 32
    %v1247 = vpop.permute.xlu0 %1246
    %v1249 = vadd.f32 %v1239, %v1247
    %v1250 = vtanh.pop %v1249
    %1252 = vrot.lane.b32.xlu0 %v1250, 64
    %v1253 = vpop.permute.xlu0 %1252
    %v1255 = vmul.f32 %v1237, %v1253
    %1257 = vrot.lane.b32.xlu0 %v1255, 32
    %v1258 = vpop.permute.xlu0 %1257
    %1260 = vst.msk [vmem:[#allocation2 + $0xc] sm:$0x1] %vm692, %v1258
    %1261 = vmatpush.bf16.msra.mxu0 0
    %1262 = vmatpush.bf16.msra.mxu0 0
    %1263 = vmatpush.bf16.msra.mxu0 0
    %1264 = vmatpush.bf16.msra.mxu0 0
    %1265 = vmatpush.bf16.msra.mxu0 0
    %1266 = vmatpush.bf16.msra.mxu0 0
    %1267 = vmatpush.bf16.msra.mxu0 %v549
    %1268 = vmatpush.bf16.msra.mxu0 %v548
    %1269 = vmatmul.bf16.gmra.mxu0 %v1203
    %v1270 = vpop.f32.mrf.mxu0
    %v1271 = vadd.f32 0.0, %v1270
    %v1272 = vpop.f32.mrf.mxu0
    %1273 = vdwg.mxu0
    %v1275 = vrot.slane %v1271, 3
    %v1277 = vadd.f32 %v293, %v1275
    %v1278 = vxor.u32 %v1277, 2147483648
    %v1279 = vmul.f32 %v1278, 1.442695
    %v1280 = vpow.pop %v1279
    %v1281 = vadd.f32 %v1280, 1.0
    %v1282 = vrcp.pop %v1281
    %v1283 = vmul.f32 %v1281, %v1282
    %v1284 = vsub.f32 1.0, %v1283
    %v1285 = vmul.f32 %v1282, %v1284
    %v1286 = vadd.f32 %v1282, %v1285
    %vm1287 = vweird.f32 %v1281
    %vm1288 = vweird.f32 %v1282
    %vm1289 = vmor %vm1287, %vm1288
    %v1290 = vsel %vm1289, %v1282, %v1286
    %v1291 = vand.u32 2147483647, %v1281
    %vm1292 = vcmp.eq.f32.partialorder %v1291, 8.507059e+37
    %v1293 = vand.u32 %v1281, 2147483648
    %v1294 = vor.u32 1.1754944e-38, %v1293
    %v1295 = vsel %vm1292, %v1294, %v1290
    %v1296 = vmul.f32 1.0, %v1295
    %v1297 = vtanh.pop %v1277
    %v1299 = vrot.slane %v1170, 7
    %v1301 = vmul.f32 %v1296, %v1299
    %1303 = vrot.lane.b32.xlu0 %v1297, 64
    %v1304 = vpop.permute.xlu0 %1303
    %v1306 = vmul.f32 %v1296, %v1304
    %1308 = vrot.lane.b32.xlu0 %v1306, 32
    %v1309 = vpop.permute.xlu0 %1308
    %v1311 = vadd.f32 %v1301, %v1309
    %v1312 = vtanh.pop %v1311
    %1314 = vrot.lane.b32.xlu0 %v1312, 64
    %v1315 = vpop.permute.xlu0 %1314
    %v1317 = vmul.f32 %v1296, %v1315
    %v1318 = vpack.c.bf16 %v1317, %v1317
    %v1319 = vpack.c.bf16 %v1255, %v1255
    %1321 = vrot.lane.b32.xlu0 %v1319, 32
    %v1322 = vpop.permute.xlu0 %1321
    %v1324 = vsel %vm542, %v1322, 0
    %1326 = vmatpush.bf16.msra.mxu0 0
    %1327 = vmatpush.bf16.msra.mxu0 0
    %1328 = vmatpush.bf16.msra.mxu0 0
    %1329 = vmatpush.bf16.msra.mxu0 0
    %1330 = vmatpush.bf16.msra.mxu0 0
    %1331 = vmatpush.bf16.msra.mxu0 0
    %1332 = vmatpush.bf16.msra.mxu0 %v561
    %1333 = vmatpush.bf16.msra.mxu0 %v560
    %1334 = vmatmul.bf16.gmra.mxu0 %v1324
    %v1335 = vpop.f32.mrf.mxu0
    %v1336 = vadd.f32 0.0, %v1335
    %v1337 = vpop.f32.mrf.mxu0
    %1338 = vdwg.mxu0
    %v1340 = vshrl.u32 %v1318, 16
    %v1342 = vrot.slane %v1340, 2
    %1343 = vrot.lane.b32.xlu0 %v1342, 32
    %v1344 = vpop.permute.xlu0 %1343
    %v1346 = vsel %vm542, %v1344, 0
    %1348 = vmatpush.bf16.msra.mxu0 0
    %1349 = vmatpush.bf16.msra.mxu0 0
    %1350 = vmatpush.bf16.msra.mxu0 0
    %1351 = vmatpush.bf16.msra.mxu0 0
    %1352 = vmatpush.bf16.msra.mxu0 0
    %1353 = vmatpush.bf16.msra.mxu0 0
    %1354 = vmatpush.bf16.msra.mxu0 %v555
    %1355 = vmatpush.bf16.msra.mxu0 %v554
    %1356 = vmatmul.bf16.gmra.mxu0 %v1346
    %v1357 = vpop.f32.mrf.mxu0
    %v1358 = vadd.f32 %v1336, %v1357
    %v1359 = vpop.f32.mrf.mxu0
    %1360 = vdwg.mxu0
    %v1361 = vadd.f32 %v1358, %v562
    %v1362 = vxor.u32 %v1361, 2147483648
    %v1363 = vmul.f32 %v1362, 1.442695
    %v1364 = vpow.pop %v1363
    %v1365 = vadd.f32 %v1364, 1.0
    %v1366 = vrcp.pop %v1365
    %v1367 = vmul.f32 %v1365, %v1366
    %v1368 = vsub.f32 1.0, %v1367
    %v1369 = vmul.f32 %v1366, %v1368
    %v1370 = vadd.f32 %v1366, %v1369
    %vm1371 = vweird.f32 %v1365
    %vm1372 = vweird.f32 %v1366
    %vm1373 = vmor %vm1371, %vm1372
    %v1374 = vsel %vm1373, %v1366, %v1370
    %v1375 = vand.u32 2147483647, %v1365
    %vm1376 = vcmp.eq.f32.partialorder %v1375, 8.507059e+37
    %v1377 = vand.u32 %v1365, 2147483648
    %v1378 = vor.u32 1.1754944e-38, %v1377
    %v1379 = vsel %vm1376, %v1378, %v1374
    %v1380 = vmul.f32 1.0, %v1379
    %v1381 = vtanh.pop %v1361
    %v1382 = vmul.f32 %v1380, %v1249
    %1384 = vrot.lane.b32.xlu0 %v1381, 64
    %v1385 = vpop.permute.xlu0 %1384
    %v1387 = vmul.f32 %v1380, %v1385
    %1389 = vrot.lane.b32.xlu0 %v1387, 32
    %v1390 = vpop.permute.xlu0 %1389
    %v1392 = vadd.f32 %v1382, %v1390
    %v1393 = vtanh.pop %v1392
    %1395 = vrot.lane.b32.xlu0 %v1393, 64
    %v1396 = vpop.permute.xlu0 %1395
    %v1398 = vmul.f32 %v1380, %v1396
    %1400 = vrot.lane.b32.xlu0 %v1398, 32
    %v1401 = vpop.permute.xlu0 %1400
    %1403 = vst.msk [vmem:[#allocation2 + $0xd] sm:$0x1] %vm692, %v1401
    %1404 = vmatpush.bf16.msra.mxu0 0
    %1405 = vmatpush.bf16.msra.mxu0 0
    %1406 = vmatpush.bf16.msra.mxu0 0
    %1407 = vmatpush.bf16.msra.mxu0 0
    %1408 = vmatpush.bf16.msra.mxu0 0
    %1409 = vmatpush.bf16.msra.mxu0 0
    %1410 = vmatpush.bf16.msra.mxu0 %v549
    %1411 = vmatpush.bf16.msra.mxu0 %v548
    %1412 = vmatmul.bf16.gmra.mxu0 %v1346
    %v1413 = vpop.f32.mrf.mxu0
    %v1414 = vadd.f32 0.0, %v1413
    %v1415 = vpop.f32.mrf.mxu0
    %1416 = vdwg.mxu0
    %v1418 = vrot.slane %v1414, 2
    %v1420 = vadd.f32 %v293, %v1418
    %v1421 = vxor.u32 %v1420, 2147483648
    %v1422 = vmul.f32 %v1421, 1.442695
    %v1423 = vpow.pop %v1422
    %v1424 = vadd.f32 %v1423, 1.0
    %v1425 = vrcp.pop %v1424
    %v1426 = vmul.f32 %v1424, %v1425
    %v1427 = vsub.f32 1.0, %v1426
    %v1428 = vmul.f32 %v1425, %v1427
    %v1429 = vadd.f32 %v1425, %v1428
    %vm1430 = vweird.f32 %v1424
    %vm1431 = vweird.f32 %v1425
    %vm1432 = vmor %vm1430, %vm1431
    %v1433 = vsel %vm1432, %v1425, %v1429
    %v1434 = vand.u32 2147483647, %v1424
    %vm1435 = vcmp.eq.f32.partialorder %v1434, 8.507059e+37
    %v1436 = vand.u32 %v1424, 2147483648
    %v1437 = vor.u32 1.1754944e-38, %v1436
    %v1438 = vsel %vm1435, %v1437, %v1433
    %v1439 = vmul.f32 1.0, %v1438
    %v1440 = vtanh.pop %v1420
    %v1442 = vrot.slane %v1311, 7
    %v1444 = vmul.f32 %v1439, %v1442
    %1446 = vrot.lane.b32.xlu0 %v1440, 64
    %v1447 = vpop.permute.xlu0 %1446
    %v1449 = vmul.f32 %v1439, %v1447
    %1451 = vrot.lane.b32.xlu0 %v1449, 32
    %v1452 = vpop.permute.xlu0 %1451
    %v1454 = vadd.f32 %v1444, %v1452
    %v1455 = vtanh.pop %v1454
    %1457 = vrot.lane.b32.xlu0 %v1455, 64
    %v1458 = vpop.permute.xlu0 %1457
    %v1460 = vmul.f32 %v1439, %v1458
    %v1461 = vpack.c.bf16 %v1460, %v1460
    %v1462 = vpack.c.bf16 %v1398, %v1398
    %1464 = vrot.lane.b32.xlu0 %v1462, 32
    %v1465 = vpop.permute.xlu0 %1464
    %v1467 = vsel %vm542, %v1465, 0
    %1469 = vmatpush.bf16.msra.mxu0 0
    %1470 = vmatpush.bf16.msra.mxu0 0
    %1471 = vmatpush.bf16.msra.mxu0 0
    %1472 = vmatpush.bf16.msra.mxu0 0
    %1473 = vmatpush.bf16.msra.mxu0 0
    %1474 = vmatpush.bf16.msra.mxu0 0
    %1475 = vmatpush.bf16.msra.mxu0 %v561
    %1476 = vmatpush.bf16.msra.mxu0 %v560
    %1477 = vmatmul.bf16.gmra.mxu0 %v1467
    %v1478 = vpop.f32.mrf.mxu0
    %v1479 = vadd.f32 0.0, %v1478
    %v1480 = vpop.f32.mrf.mxu0
    %1481 = vdwg.mxu0
    %v1483 = vrot.slane %v1461, 3
    %1484 = vrot.lane.b32.xlu0 %v1483, 32
    %v1485 = vpop.permute.xlu0 %1484
    %v1487 = vsel %vm542, %v1485, 0
    %1489 = vmatpush.bf16.msra.mxu0 0
    %1490 = vmatpush.bf16.msra.mxu0 0
    %1491 = vmatpush.bf16.msra.mxu0 0
    %1492 = vmatpush.bf16.msra.mxu0 0
    %1493 = vmatpush.bf16.msra.mxu0 0
    %1494 = vmatpush.bf16.msra.mxu0 0
    %1495 = vmatpush.bf16.msra.mxu0 %v555
    %1496 = vmatpush.bf16.msra.mxu0 %v554
    %1497 = vmatmul.bf16.gmra.mxu0 %v1487
    %v1498 = vpop.f32.mrf.mxu0
    %v1499 = vadd.f32 %v1479, %v1498
    %v1500 = vpop.f32.mrf.mxu0
    %1501 = vdwg.mxu0
    %v1502 = vadd.f32 %v1499, %v562
    %v1503 = vxor.u32 %v1502, 2147483648
    %v1504 = vmul.f32 %v1503, 1.442695
    %v1505 = vpow.pop %v1504
    %v1506 = vadd.f32 %v1505, 1.0
    %v1507 = vrcp.pop %v1506
    %v1508 = vmul.f32 %v1506, %v1507
    %v1509 = vsub.f32 1.0, %v1508
    %v1510 = vmul.f32 %v1507, %v1509
    %v1511 = vadd.f32 %v1507, %v1510
    %vm1512 = vweird.f32 %v1506
    %vm1513 = vweird.f32 %v1507
    %vm1514 = vmor %vm1512, %vm1513
    %v1515 = vsel %vm1514, %v1507, %v1511
    %v1516 = vand.u32 2147483647, %v1506
    %vm1517 = vcmp.eq.f32.partialorder %v1516, 8.507059e+37
    %v1518 = vand.u32 %v1506, 2147483648
    %v1519 = vor.u32 1.1754944e-38, %v1518
    %v1520 = vsel %vm1517, %v1519, %v1515
    %v1521 = vmul.f32 1.0, %v1520
    %v1522 = vtanh.pop %v1502
    %v1523 = vmul.f32 %v1521, %v1392
    %1525 = vrot.lane.b32.xlu0 %v1522, 64
    %v1526 = vpop.permute.xlu0 %1525
    %v1528 = vmul.f32 %v1521, %v1526
    %1530 = vrot.lane.b32.xlu0 %v1528, 32
    %v1531 = vpop.permute.xlu0 %1530
    %v1533 = vadd.f32 %v1523, %v1531
    %v1534 = vtanh.pop %v1533
    %1536 = vrot.lane.b32.xlu0 %v1534, 64
    %v1537 = vpop.permute.xlu0 %1536
    %v1539 = vmul.f32 %v1521, %v1537
    %1541 = vrot.lane.b32.xlu0 %v1539, 32
    %v1542 = vpop.permute.xlu0 %1541
    %1544 = vst.msk [vmem:[#allocation2 + $0xe] sm:$0x1] %vm692, %v1542
    %1545 = vmatpush.bf16.msra.mxu0 0
    %1546 = vmatpush.bf16.msra.mxu0 0
    %1547 = vmatpush.bf16.msra.mxu0 0
    %1548 = vmatpush.bf16.msra.mxu0 0
    %1549 = vmatpush.bf16.msra.mxu0 0
    %1550 = vmatpush.bf16.msra.mxu0 0
    %1551 = vmatpush.bf16.msra.mxu0 %v549
    %1552 = vmatpush.bf16.msra.mxu0 %v548
    %1553 = vmatmul.bf16.gmra.mxu0 %v1487
    %v1554 = vpop.f32.mrf.mxu0
    %v1555 = vadd.f32 0.0, %v1554
    %v1556 = vpop.f32.mrf.mxu0
    %1557 = vdwg.mxu0
    %v1559 = vrot.slane %v1555, 1
    %v1561 = vadd.f32 %v293, %v1559
    %v1562 = vxor.u32 %v1561, 2147483648
    %v1563 = vmul.f32 %v1562, 1.442695
    %v1564 = vpow.pop %v1563
    %v1565 = vadd.f32 %v1564, 1.0
    %v1566 = vrcp.pop %v1565
    %v1567 = vmul.f32 %v1565, %v1566
    %v1568 = vsub.f32 1.0, %v1567
    %v1569 = vmul.f32 %v1566, %v1568
    %v1570 = vadd.f32 %v1566, %v1569
    %vm1571 = vweird.f32 %v1565
    %vm1572 = vweird.f32 %v1566
    %vm1573 = vmor %vm1571, %vm1572
    %v1574 = vsel %vm1573, %v1566, %v1570
    %v1575 = vand.u32 2147483647, %v1565
    %vm1576 = vcmp.eq.f32.partialorder %v1575, 8.507059e+37
    %v1577 = vand.u32 %v1565, 2147483648
    %v1578 = vor.u32 1.1754944e-38, %v1577
    %v1579 = vsel %vm1576, %v1578, %v1574
    %v1580 = vmul.f32 1.0, %v1579
    %v1581 = vtanh.pop %v1561
    %v1583 = vrot.slane %v1454, 7
    %v1585 = vmul.f32 %v1580, %v1583
    %1587 = vrot.lane.b32.xlu0 %v1581, 64
    %v1588 = vpop.permute.xlu0 %1587
    %v1590 = vmul.f32 %v1580, %v1588
    %1592 = vrot.lane.b32.xlu0 %v1590, 32
    %v1593 = vpop.permute.xlu0 %1592
    %v1595 = vadd.f32 %v1585, %v1593
    %v1596 = vtanh.pop %v1595
    %1598 = vrot.lane.b32.xlu0 %v1596, 64
    %v1599 = vpop.permute.xlu0 %1598
    %v1601 = vmul.f32 %v1580, %v1599
    %v1602 = vpack.c.bf16 %v1601, %v1601
    %v1603 = vpack.c.bf16 %v1539, %v1539
    %1605 = vrot.lane.b32.xlu0 %v1603, 32
    %v1606 = vpop.permute.xlu0 %1605
    %v1608 = vsel %vm542, %v1606, 0
    %1610 = vmatpush.bf16.msra.mxu0 0
    %1611 = vmatpush.bf16.msra.mxu0 0
    %1612 = vmatpush.bf16.msra.mxu0 0
    %1613 = vmatpush.bf16.msra.mxu0 0
    %1614 = vmatpush.bf16.msra.mxu0 0
    %1615 = vmatpush.bf16.msra.mxu0 0
    %1616 = vmatpush.bf16.msra.mxu0 %v561
    %1617 = vmatpush.bf16.msra.mxu0 %v560
    %1618 = vmatmul.bf16.gmra.mxu0 %v1608
    %v1619 = vpop.f32.mrf.mxu0
    %v1620 = vadd.f32 0.0, %v1619
    %v1621 = vpop.f32.mrf.mxu0
    %1622 = vdwg.mxu0
    %v1624 = vshrl.u32 %v1602, 16
    %v1626 = vrot.slane %v1624, 3
    %1627 = vrot.lane.b32.xlu0 %v1626, 32
    %v1628 = vpop.permute.xlu0 %1627
    %v1630 = vsel %vm542, %v1628, 0
    %1632 = vmatpush.bf16.msra.mxu0 0
    %1633 = vmatpush.bf16.msra.mxu0 0
    %1634 = vmatpush.bf16.msra.mxu0 0
    %1635 = vmatpush.bf16.msra.mxu0 0
    %1636 = vmatpush.bf16.msra.mxu0 0
    %1637 = vmatpush.bf16.msra.mxu0 0
    %1638 = vmatpush.bf16.msra.mxu0 %v555
    %1639 = vmatpush.bf16.msra.mxu0 %v554
    %1640 = vmatmul.bf16.gmra.mxu0 %v1630
    %v1641 = vpop.f32.mrf.mxu0
    %v1642 = vadd.f32 %v1620, %v1641
    %v1643 = vpop.f32.mrf.mxu0
    %1644 = vdwg.mxu0
    %v1645 = vadd.f32 %v1642, %v562
    %v1646 = vxor.u32 %v1645, 2147483648
    %v1647 = vmul.f32 %v1646, 1.442695
    %v1648 = vpow.pop %v1647
    %v1649 = vadd.f32 %v1648, 1.0
    %v1650 = vrcp.pop %v1649
    %v1651 = vmul.f32 %v1649, %v1650
    %v1652 = vsub.f32 1.0, %v1651
    %v1653 = vmul.f32 %v1650, %v1652
    %v1654 = vadd.f32 %v1650, %v1653
    %vm1655 = vweird.f32 %v1649
    %vm1656 = vweird.f32 %v1650
    %vm1657 = vmor %vm1655, %vm1656
    %v1658 = vsel %vm1657, %v1650, %v1654
    %v1659 = vand.u32 2147483647, %v1649
    %vm1660 = vcmp.eq.f32.partialorder %v1659, 8.507059e+37
    %v1661 = vand.u32 %v1649, 2147483648
    %v1662 = vor.u32 1.1754944e-38, %v1661
    %v1663 = vsel %vm1660, %v1662, %v1658
    %v1664 = vmul.f32 1.0, %v1663
    %v1665 = vtanh.pop %v1645
    %v1666 = vmul.f32 %v1664, %v1533
    %1668 = vrot.lane.b32.xlu0 %v1665, 64
    %v1669 = vpop.permute.xlu0 %1668
    %v1671 = vmul.f32 %v1664, %v1669
    %1673 = vrot.lane.b32.xlu0 %v1671, 32
    %v1674 = vpop.permute.xlu0 %1673
    %v1676 = vadd.f32 %v1666, %v1674
    %v1677 = vtanh.pop %v1676
    %1679 = vrot.lane.b32.xlu0 %v1677, 64
    %v1680 = vpop.permute.xlu0 %1679
    %v1682 = vmul.f32 %v1664, %v1680
    %1684 = vrot.lane.b32.xlu0 %v1682, 32
    %v1685 = vpop.permute.xlu0 %1684
    %1687 = vst.msk [vmem:[#allocation2 + $0xf] sm:$0x1] %vm692, %v1685
    %v1688 = vld [vmem:[#allocation2] sm:$0xff]
    %v1689 = vld [vmem:[#allocation2 + $0x8] sm:$0xff]
    %v1690 = vld [vmem:[#allocation6 + $0xf8] sm:$0xff]
    %v1691 = vld [vmem:[#allocation6 + $0x100] sm:$0xff]
    %v1692 = vld [vmem:[#allocation6 + $0x108] sm:$0xff]
    %v1693 = vld [vmem:[#allocation6 + $0x110] sm:$0xff]
    %v1694 = vld [vmem:[#allocation6 + $0x118] sm:$0x1]
    %v1695 = vperm.slane %v1694, 0
    %v1697 = vsel %vm542, %v1688, 0
    %v1700 = vsel %vm542, %v1689, 0
    %1702 = vmatpush.msra.mxu0 0.0
    %1703 = vmatpush.msra.mxu0 0.0
    %1704 = vmatpush.msra.mxu0 0.0
    %1705 = vmatpush.msra.mxu0 0.0
    %1706 = vmatpush.msra.mxu0 0.0
    %1707 = vmatpush.msra.mxu0 0.0
    %1708 = vmatpush.msra.mxu0 0.0
    %1709 = vmatpush.msra.mxu0 0.0
    %1710 = vmatpush.msra.mxu0 0.0
    %1711 = vmatpush.msra.mxu0 0.0
    %1712 = vmatpush.msra.mxu0 0.0
    %1713 = vmatpush.msra.mxu0 0.0
    %v1714 = vand.u32 %v1693, 4294901760
    %1715 = vmatpush.msra.mxu0 %v1714
    %v1716 = vand.u32 %v1692, 4294901760
    %1717 = vmatpush.msra.mxu0 %v1716
    %v1718 = vand.u32 %v1691, 4294901760
    %1719 = vmatpush.msra.mxu0 %v1718
    %v1720 = vand.u32 %v1690, 4294901760
    %1721 = vmatpush.msra.mxu0 %v1720
    %v1722 = vand.u32 %v1697, 4294901760
    %v1723 = vsub.f32 %v1697, %v1722
    %v1724 = vand.u32 %v1723, 4294901760
    %v1725 = vsub.f32 %v1723, %v1724
    %v1726 = vand.u32 %v1725, 4294901760
    %1727 = vmatmul.f32.gmra.mxu0 %v1726
    %v1728 = vpop.f32.mrf.mxu0
    %v1729 = vadd.f32 %v1695, %v1728
    %v1730 = vand.u32 %v1700, 4294901760
    %v1731 = vsub.f32 %v1700, %v1730
    %v1732 = vand.u32 %v1731, 4294901760
    %v1733 = vsub.f32 %v1731, %v1732
    %v1734 = vand.u32 %v1733, 4294901760
    %1735 = vmatmul.f32.gmra.mxu0 %v1734
    %v1736 = vpop.f32.mrf.mxu0
    %v1737 = vadd.f32 %v1695, %v1736
    %1738 = vdwg.mxu0
    %1739 = vmatpush.msra.mxu0 0.0
    %1740 = vmatpush.msra.mxu0 0.0
    %1741 = vmatpush.msra.mxu0 0.0
    %1742 = vmatpush.msra.mxu0 0.0
    %1743 = vmatpush.msra.mxu0 0.0
    %1744 = vmatpush.msra.mxu0 0.0
    %1745 = vmatpush.msra.mxu0 0.0
    %1746 = vmatpush.msra.mxu0 0.0
    %1747 = vmatpush.msra.mxu0 0.0
    %1748 = vmatpush.msra.mxu0 0.0
    %1749 = vmatpush.msra.mxu0 0.0
    %1750 = vmatpush.msra.mxu0 0.0
    %v1751 = vand.u32 %v1693, 4294901760
    %v1752 = vsub.f32 %v1693, %v1751
    %v1753 = vand.u32 %v1752, 4294901760
    %v1754 = vsub.f32 %v1752, %v1753
    %v1755 = vand.u32 %v1754, 4294901760
    %1756 = vmatpush.msra.mxu0 %v1755
    %v1757 = vand.u32 %v1692, 4294901760
    %v1758 = vsub.f32 %v1692, %v1757
    %v1759 = vand.u32 %v1758, 4294901760
    %v1760 = vsub.f32 %v1758, %v1759
    %v1761 = vand.u32 %v1760, 4294901760
    %1762 = vmatpush.msra.mxu0 %v1761
    %v1763 = vand.u32 %v1691, 4294901760
    %v1764 = vsub.f32 %v1691, %v1763
    %v1765 = vand.u32 %v1764, 4294901760
    %v1766 = vsub.f32 %v1764, %v1765
    %v1767 = vand.u32 %v1766, 4294901760
    %1768 = vmatpush.msra.mxu0 %v1767
    %v1769 = vand.u32 %v1690, 4294901760
    %v1770 = vsub.f32 %v1690, %v1769
    %v1771 = vand.u32 %v1770, 4294901760
    %v1772 = vsub.f32 %v1770, %v1771
    %v1773 = vand.u32 %v1772, 4294901760
    %1774 = vmatpush.msra.mxu0 %v1773
    %v1775 = vand.u32 %v1697, 4294901760
    %1776 = vmatmul.f32.gmra.mxu0 %v1775
    %v1777 = vpop.f32.mrf.mxu0
    %v1778 = vadd.f32 %v1729, %v1777
    %v1779 = vand.u32 %v1700, 4294901760
    %1780 = vmatmul.f32.gmra.mxu0 %v1779
    %v1781 = vpop.f32.mrf.mxu0
    %v1782 = vadd.f32 %v1737, %v1781
    %1783 = vdwg.mxu0
    %1784 = vmatpush.msra.mxu0 0.0
    %1785 = vmatpush.msra.mxu0 0.0
    %1786 = vmatpush.msra.mxu0 0.0
    %1787 = vmatpush.msra.mxu0 0.0
    %1788 = vmatpush.msra.mxu0 0.0
    %1789 = vmatpush.msra.mxu0 0.0
    %1790 = vmatpush.msra.mxu0 0.0
    %1791 = vmatpush.msra.mxu0 0.0
    %1792 = vmatpush.msra.mxu0 0.0
    %1793 = vmatpush.msra.mxu0 0.0
    %1794 = vmatpush.msra.mxu0 0.0
    %1795 = vmatpush.msra.mxu0 0.0
    %v1796 = vand.u32 %v1693, 4294901760
    %v1797 = vsub.f32 %v1693, %v1796
    %1798 = vmatpush.msra.mxu0 %v1797
    %v1799 = vand.u32 %v1692, 4294901760
    %v1800 = vsub.f32 %v1692, %v1799
    %1801 = vmatpush.msra.mxu0 %v1800
    %v1802 = vand.u32 %v1691, 4294901760
    %v1803 = vsub.f32 %v1691, %v1802
    %1804 = vmatpush.msra.mxu0 %v1803
    %v1805 = vand.u32 %v1690, 4294901760
    %v1806 = vsub.f32 %v1690, %v1805
    %1807 = vmatpush.msra.mxu0 %v1806
    %v1808 = vand.u32 %v1697, 4294901760
    %v1809 = vsub.f32 %v1697, %v1808
    %1810 = vmatmul.f32.gmra.mxu0 %v1809
    %v1811 = vpop.f32.mrf.mxu0
    %v1812 = vadd.f32 %v1778, %v1811
    %v1813 = vand.u32 %v1700, 4294901760
    %v1814 = vsub.f32 %v1700, %v1813
    %1815 = vmatmul.f32.gmra.mxu0 %v1814
    %v1816 = vpop.f32.mrf.mxu0
    %v1817 = vadd.f32 %v1782, %v1816
    %1818 = vdwg.mxu0
    %1819 = vmatpush.msra.mxu0 0.0
    %1820 = vmatpush.msra.mxu0 0.0
    %1821 = vmatpush.msra.mxu0 0.0
    %1822 = vmatpush.msra.mxu0 0.0
    %1823 = vmatpush.msra.mxu0 0.0
    %1824 = vmatpush.msra.mxu0 0.0
    %1825 = vmatpush.msra.mxu0 0.0
    %1826 = vmatpush.msra.mxu0 0.0
    %1827 = vmatpush.msra.mxu0 0.0
    %1828 = vmatpush.msra.mxu0 0.0
    %1829 = vmatpush.msra.mxu0 0.0
    %1830 = vmatpush.msra.mxu0 0.0
    %v1831 = vand.u32 %v1693, 4294901760
    %1832 = vmatpush.msra.mxu0 %v1831
    %v1833 = vand.u32 %v1692, 4294901760
    %1834 = vmatpush.msra.mxu0 %v1833
    %v1835 = vand.u32 %v1691, 4294901760
    %1836 = vmatpush.msra.mxu0 %v1835
    %v1837 = vand.u32 %v1690, 4294901760
    %1838 = vmatpush.msra.mxu0 %v1837
    %v1839 = vand.u32 %v1697, 4294901760
    %v1840 = vsub.f32 %v1697, %v1839
    %v1841 = vand.u32 %v1840, 4294901760
    %1842 = vmatmul.f32.gmra.mxu0 %v1841
    %v1843 = vpop.f32.mrf.mxu0
    %v1844 = vadd.f32 %v1812, %v1843
    %v1845 = vand.u32 %v1700, 4294901760
    %v1846 = vsub.f32 %v1700, %v1845
    %v1847 = vand.u32 %v1846, 4294901760
    %1848 = vmatmul.f32.gmra.mxu0 %v1847
    %v1849 = vpop.f32.mrf.mxu0
    %v1850 = vadd.f32 %v1817, %v1849
    %1851 = vdwg.mxu0
    %1852 = vmatpush.msra.mxu0 0.0
    %1853 = vmatpush.msra.mxu0 0.0
    %1854 = vmatpush.msra.mxu0 0.0
    %1855 = vmatpush.msra.mxu0 0.0
    %1856 = vmatpush.msra.mxu0 0.0
    %1857 = vmatpush.msra.mxu0 0.0
    %1858 = vmatpush.msra.mxu0 0.0
    %1859 = vmatpush.msra.mxu0 0.0
    %1860 = vmatpush.msra.mxu0 0.0
    %1861 = vmatpush.msra.mxu0 0.0
    %1862 = vmatpush.msra.mxu0 0.0
    %1863 = vmatpush.msra.mxu0 0.0
    %v1864 = vand.u32 %v1693, 4294901760
    %v1865 = vsub.f32 %v1693, %v1864
    %v1866 = vand.u32 %v1865, 4294901760
    %1867 = vmatpush.msra.mxu0 %v1866
    %v1868 = vand.u32 %v1692, 4294901760
    %v1869 = vsub.f32 %v1692, %v1868
    %v1870 = vand.u32 %v1869, 4294901760
    %1871 = vmatpush.msra.mxu0 %v1870
    %v1872 = vand.u32 %v1691, 4294901760
    %v1873 = vsub.f32 %v1691, %v1872
    %v1874 = vand.u32 %v1873, 4294901760
    %1875 = vmatpush.msra.mxu0 %v1874
    %v1876 = vand.u32 %v1690, 4294901760
    %v1877 = vsub.f32 %v1690, %v1876
    %v1878 = vand.u32 %v1877, 4294901760
    %1879 = vmatpush.msra.mxu0 %v1878
    %v1880 = vand.u32 %v1697, 4294901760
    %1881 = vmatmul.f32.gmra.mxu0 %v1880
    %v1882 = vpop.f32.mrf.mxu0
    %v1883 = vadd.f32 %v1844, %v1882
    %v1884 = vand.u32 %v1700, 4294901760
    %1885 = vmatmul.f32.gmra.mxu0 %v1884
    %v1886 = vpop.f32.mrf.mxu0
    %v1887 = vadd.f32 %v1850, %v1886
    %1888 = vdwg.mxu0
    %1889 = vmatpush.msra.mxu0 0.0
    %1890 = vmatpush.msra.mxu0 0.0
    %1891 = vmatpush.msra.mxu0 0.0
    %1892 = vmatpush.msra.mxu0 0.0
    %1893 = vmatpush.msra.mxu0 0.0
    %1894 = vmatpush.msra.mxu0 0.0
    %1895 = vmatpush.msra.mxu0 0.0
    %1896 = vmatpush.msra.mxu0 0.0
    %1897 = vmatpush.msra.mxu0 0.0
    %1898 = vmatpush.msra.mxu0 0.0
    %1899 = vmatpush.msra.mxu0 0.0
    %1900 = vmatpush.msra.mxu0 0.0
    %v1901 = vand.u32 %v1693, 4294901760
    %1902 = vmatpush.msra.mxu0 %v1901
    %v1903 = vand.u32 %v1692, 4294901760
    %1904 = vmatpush.msra.mxu0 %v1903
    %v1905 = vand.u32 %v1691, 4294901760
    %1906 = vmatpush.msra.mxu0 %v1905
    %v1907 = vand.u32 %v1690, 4294901760
    %1908 = vmatpush.msra.mxu0 %v1907
    %v1909 = vand.u32 %v1697, 4294901760
    %1910 = vmatmul.f32.gmra.mxu0 %v1909
    %v1911 = vpop.f32.mrf.mxu0
    %v1912 = vadd.f32 %v1883, %v1911
    %v1913 = vand.u32 %v1700, 4294901760
    %1914 = vmatmul.f32.gmra.mxu0 %v1913
    %v1915 = vpop.f32.mrf.mxu0
    %v1916 = vadd.f32 %v1887, %v1915
    %1917 = vdwg.mxu0
    %vm1918 = vcmp.ge.f32.partialorder %v1912, 0.0
    %vm1919 = vcmp.ge.f32.partialorder %v1916, 0.0
    %v1920 = vmul.f32 %v1912, 0.2
    %v1921 = vmul.f32 %v1916, 0.2
    %v1922 = vsel %vm1918, %v1912, %v1920
    %v1923 = vsel %vm1919, %v1916, %v1921
    %v1924 = vld [vmem:[#allocation6 + $0x120] sm:$0xff]
    %v1925 = vld [vmem:[#allocation6 + $0x128] sm:$0xff]
    %v1926 = vld [vmem:[#allocation6 + $0x130] sm:$0xff]
    %v1927 = vld [vmem:[#allocation6 + $0x138] sm:$0xff]
    %v1928 = vld [vmem:[#allocation6 + $0x140] sm:$0xff]
    %v1929 = vld [vmem:[#allocation6 + $0x148] sm:$0xff]
    %v1930 = vld [vmem:[#allocation6 + $0x150] sm:$0xff]
    %v1931 = vld [vmem:[#allocation6 + $0x158] sm:$0xff]
    %v1932 = vld [vmem:[#allocation6 + $0x160] sm:$0x1]
    %v1933 = vperm.slane %v1932, 0
    %v1935 = vsel %vm54, %v1922, 0
    %v1938 = vsel %vm54, %v1923, 0
    %1940 = vmatpush.msra.mxu0 0.0
    %1941 = vmatpush.msra.mxu0 0.0
    %1942 = vmatpush.msra.mxu0 0.0
    %1943 = vmatpush.msra.mxu0 0.0
    %1944 = vmatpush.msra.mxu0 0.0
    %1945 = vmatpush.msra.mxu0 0.0
    %1946 = vmatpush.msra.mxu0 0.0
    %1947 = vmatpush.msra.mxu0 0.0
    %v1948 = vand.u32 %v1931, 4294901760
    %1949 = vmatpush.msra.mxu0 %v1948
    %v1950 = vand.u32 %v1930, 4294901760
    %1951 = vmatpush.msra.mxu0 %v1950
    %v1952 = vand.u32 %v1929, 4294901760
    %1953 = vmatpush.msra.mxu0 %v1952
    %v1954 = vand.u32 %v1928, 4294901760
    %1955 = vmatpush.msra.mxu0 %v1954
    %v1956 = vand.u32 %v1927, 4294901760
    %1957 = vmatpush.msra.mxu0 %v1956
    %v1958 = vand.u32 %v1926, 4294901760
    %1959 = vmatpush.msra.mxu0 %v1958
    %v1960 = vand.u32 %v1925, 4294901760
    %1961 = vmatpush.msra.mxu0 %v1960
    %v1962 = vand.u32 %v1924, 4294901760
    %1963 = vmatpush.msra.mxu0 %v1962
    %v1964 = vand.u32 %v1935, 4294901760
    %v1965 = vsub.f32 %v1935, %v1964
    %v1966 = vand.u32 %v1965, 4294901760
    %v1967 = vsub.f32 %v1965, %v1966
    %v1968 = vand.u32 %v1967, 4294901760
    %1969 = vmatmul.f32.gmra.mxu0 %v1968
    %v1970 = vpop.f32.mrf.mxu0
    %v1971 = vadd.f32 %v1933, %v1970
    %v1972 = vand.u32 %v1938, 4294901760
    %v1973 = vsub.f32 %v1938, %v1972
    %v1974 = vand.u32 %v1973, 4294901760
    %v1975 = vsub.f32 %v1973, %v1974
    %v1976 = vand.u32 %v1975, 4294901760
    %1977 = vmatmul.f32.gmra.mxu0 %v1976
    %v1978 = vpop.f32.mrf.mxu0
    %v1979 = vadd.f32 %v1933, %v1978
    %1980 = vdwg.mxu0
    %1981 = vmatpush.msra.mxu0 0.0
    %1982 = vmatpush.msra.mxu0 0.0
    %1983 = vmatpush.msra.mxu0 0.0
    %1984 = vmatpush.msra.mxu0 0.0
    %1985 = vmatpush.msra.mxu0 0.0
    %1986 = vmatpush.msra.mxu0 0.0
    %1987 = vmatpush.msra.mxu0 0.0
    %1988 = vmatpush.msra.mxu0 0.0
    %v1989 = vand.u32 %v1931, 4294901760
    %v1990 = vsub.f32 %v1931, %v1989
    %v1991 = vand.u32 %v1990, 4294901760
    %v1992 = vsub.f32 %v1990, %v1991
    %v1993 = vand.u32 %v1992, 4294901760
    %1994 = vmatpush.msra.mxu0 %v1993
    %v1995 = vand.u32 %v1930, 4294901760
    %v1996 = vsub.f32 %v1930, %v1995
    %v1997 = vand.u32 %v1996, 4294901760
    %v1998 = vsub.f32 %v1996, %v1997
    %v1999 = vand.u32 %v1998, 4294901760
    %2000 = vmatpush.msra.mxu0 %v1999
    %v2001 = vand.u32 %v1929, 4294901760
    %v2002 = vsub.f32 %v1929, %v2001
    %v2003 = vand.u32 %v2002, 4294901760
    %v2004 = vsub.f32 %v2002, %v2003
    %v2005 = vand.u32 %v2004, 4294901760
    %2006 = vmatpush.msra.mxu0 %v2005
    %v2007 = vand.u32 %v1928, 4294901760
    %v2008 = vsub.f32 %v1928, %v2007
    %v2009 = vand.u32 %v2008, 4294901760
    %v2010 = vsub.f32 %v2008, %v2009
    %v2011 = vand.u32 %v2010, 4294901760
    %2012 = vmatpush.msra.mxu0 %v2011
    %v2013 = vand.u32 %v1927, 4294901760
    %v2014 = vsub.f32 %v1927, %v2013
    %v2015 = vand.u32 %v2014, 4294901760
    %v2016 = vsub.f32 %v2014, %v2015
    %v2017 = vand.u32 %v2016, 4294901760
    %2018 = vmatpush.msra.mxu0 %v2017
    %v2019 = vand.u32 %v1926, 4294901760
    %v2020 = vsub.f32 %v1926, %v2019
    %v2021 = vand.u32 %v2020, 4294901760
    %v2022 = vsub.f32 %v2020, %v2021
    %v2023 = vand.u32 %v2022, 4294901760
    %2024 = vmatpush.msra.mxu0 %v2023
    %v2025 = vand.u32 %v1925, 4294901760
    %v2026 = vsub.f32 %v1925, %v2025
    %v2027 = vand.u32 %v2026, 4294901760
    %v2028 = vsub.f32 %v2026, %v2027
    %v2029 = vand.u32 %v2028, 4294901760
    %2030 = vmatpush.msra.mxu0 %v2029
    %v2031 = vand.u32 %v1924, 4294901760
    %v2032 = vsub.f32 %v1924, %v2031
    %v2033 = vand.u32 %v2032, 4294901760
    %v2034 = vsub.f32 %v2032, %v2033
    %v2035 = vand.u32 %v2034, 4294901760
    %2036 = vmatpush.msra.mxu0 %v2035
    %v2037 = vand.u32 %v1935, 4294901760
    %2038 = vmatmul.f32.gmra.mxu0 %v2037
    %v2039 = vpop.f32.mrf.mxu0
    %v2040 = vadd.f32 %v1971, %v2039
    %v2041 = vand.u32 %v1938, 4294901760
    %2042 = vmatmul.f32.gmra.mxu0 %v2041
    %v2043 = vpop.f32.mrf.mxu0
    %v2044 = vadd.f32 %v1979, %v2043
    %2045 = vdwg.mxu0
    %2046 = vmatpush.msra.mxu0 0.0
    %2047 = vmatpush.msra.mxu0 0.0
    %2048 = vmatpush.msra.mxu0 0.0
    %2049 = vmatpush.msra.mxu0 0.0
    %2050 = vmatpush.msra.mxu0 0.0
    %2051 = vmatpush.msra.mxu0 0.0
    %2052 = vmatpush.msra.mxu0 0.0
    %2053 = vmatpush.msra.mxu0 0.0
    %v2054 = vand.u32 %v1931, 4294901760
    %v2055 = vsub.f32 %v1931, %v2054
    %2056 = vmatpush.msra.mxu0 %v2055
    %v2057 = vand.u32 %v1930, 4294901760
    %v2058 = vsub.f32 %v1930, %v2057
    %2059 = vmatpush.msra.mxu0 %v2058
    %v2060 = vand.u32 %v1929, 4294901760
    %v2061 = vsub.f32 %v1929, %v2060
    %2062 = vmatpush.msra.mxu0 %v2061
    %v2063 = vand.u32 %v1928, 4294901760
    %v2064 = vsub.f32 %v1928, %v2063
    %2065 = vmatpush.msra.mxu0 %v2064
    %v2066 = vand.u32 %v1927, 4294901760
    %v2067 = vsub.f32 %v1927, %v2066
    %2068 = vmatpush.msra.mxu0 %v2067
    %v2069 = vand.u32 %v1926, 4294901760
    %v2070 = vsub.f32 %v1926, %v2069
    %2071 = vmatpush.msra.mxu0 %v2070
    %v2072 = vand.u32 %v1925, 4294901760
    %v2073 = vsub.f32 %v1925, %v2072
    %2074 = vmatpush.msra.mxu0 %v2073
    %v2075 = vand.u32 %v1924, 4294901760
    %v2076 = vsub.f32 %v1924, %v2075
    %2077 = vmatpush.msra.mxu0 %v2076
    %v2078 = vand.u32 %v1935, 4294901760
    %v2079 = vsub.f32 %v1935, %v2078
    %2080 = vmatmul.f32.gmra.mxu0 %v2079
    %v2081 = vpop.f32.mrf.mxu0
    %v2082 = vadd.f32 %v2040, %v2081
    %v2083 = vand.u32 %v1938, 4294901760
    %v2084 = vsub.f32 %v1938, %v2083
    %2085 = vmatmul.f32.gmra.mxu0 %v2084
    %v2086 = vpop.f32.mrf.mxu0
    %v2087 = vadd.f32 %v2044, %v2086
    %2088 = vdwg.mxu0
    %2089 = vmatpush.msra.mxu0 0.0
    %2090 = vmatpush.msra.mxu0 0.0
    %2091 = vmatpush.msra.mxu0 0.0
    %2092 = vmatpush.msra.mxu0 0.0
    %2093 = vmatpush.msra.mxu0 0.0
    %2094 = vmatpush.msra.mxu0 0.0
    %2095 = vmatpush.msra.mxu0 0.0
    %2096 = vmatpush.msra.mxu0 0.0
    %v2097 = vand.u32 %v1931, 4294901760
    %2098 = vmatpush.msra.mxu0 %v2097
    %v2099 = vand.u32 %v1930, 4294901760
    %2100 = vmatpush.msra.mxu0 %v2099
    %v2101 = vand.u32 %v1929, 4294901760
    %2102 = vmatpush.msra.mxu0 %v2101
    %v2103 = vand.u32 %v1928, 4294901760
    %2104 = vmatpush.msra.mxu0 %v2103
    %v2105 = vand.u32 %v1927, 4294901760
    %2106 = vmatpush.msra.mxu0 %v2105
    %v2107 = vand.u32 %v1926, 4294901760
    %2108 = vmatpush.msra.mxu0 %v2107
    %v2109 = vand.u32 %v1925, 4294901760
    %2110 = vmatpush.msra.mxu0 %v2109
    %v2111 = vand.u32 %v1924, 4294901760
    %2112 = vmatpush.msra.mxu0 %v2111
    %v2113 = vand.u32 %v1935, 4294901760
    %v2114 = vsub.f32 %v1935, %v2113
    %v2115 = vand.u32 %v2114, 4294901760
    %2116 = vmatmul.f32.gmra.mxu0 %v2115
    %v2117 = vpop.f32.mrf.mxu0
    %v2118 = vadd.f32 %v2082, %v2117
    %v2119 = vand.u32 %v1938, 4294901760
    %v2120 = vsub.f32 %v1938, %v2119
    %v2121 = vand.u32 %v2120, 4294901760
    %2122 = vmatmul.f32.gmra.mxu0 %v2121
    %v2123 = vpop.f32.mrf.mxu0
    %v2124 = vadd.f32 %v2087, %v2123
    %2125 = vdwg.mxu0
    %2126 = vmatpush.msra.mxu0 0.0
    %2127 = vmatpush.msra.mxu0 0.0
    %2128 = vmatpush.msra.mxu0 0.0
    %2129 = vmatpush.msra.mxu0 0.0
    %2130 = vmatpush.msra.mxu0 0.0
    %2131 = vmatpush.msra.mxu0 0.0
    %2132 = vmatpush.msra.mxu0 0.0
    %2133 = vmatpush.msra.mxu0 0.0
    %v2134 = vand.u32 %v1931, 4294901760
    %v2135 = vsub.f32 %v1931, %v2134
    %v2136 = vand.u32 %v2135, 4294901760
    %2137 = vmatpush.msra.mxu0 %v2136
    %v2138 = vand.u32 %v1930, 4294901760
    %v2139 = vsub.f32 %v1930, %v2138
    %v2140 = vand.u32 %v2139, 4294901760
    %2141 = vmatpush.msra.mxu0 %v2140
    %v2142 = vand.u32 %v1929, 4294901760
    %v2143 = vsub.f32 %v1929, %v2142
    %v2144 = vand.u32 %v2143, 4294901760
    %2145 = vmatpush.msra.mxu0 %v2144
    %v2146 = vand.u32 %v1928, 4294901760
    %v2147 = vsub.f32 %v1928, %v2146
    %v2148 = vand.u32 %v2147, 4294901760
    %2149 = vmatpush.msra.mxu0 %v2148
    %v2150 = vand.u32 %v1927, 4294901760
    %v2151 = vsub.f32 %v1927, %v2150
    %v2152 = vand.u32 %v2151, 4294901760
    %2153 = vmatpush.msra.mxu0 %v2152
    %v2154 = vand.u32 %v1926, 4294901760
    %v2155 = vsub.f32 %v1926, %v2154
    %v2156 = vand.u32 %v2155, 4294901760
    %2157 = vmatpush.msra.mxu0 %v2156
    %v2158 = vand.u32 %v1925, 4294901760
    %v2159 = vsub.f32 %v1925, %v2158
    %v2160 = vand.u32 %v2159, 4294901760
    %2161 = vmatpush.msra.mxu0 %v2160
    %v2162 = vand.u32 %v1924, 4294901760
    %v2163 = vsub.f32 %v1924, %v2162
    %v2164 = vand.u32 %v2163, 4294901760
    %2165 = vmatpush.msra.mxu0 %v2164
    %v2166 = vand.u32 %v1935, 4294901760
    %2167 = vmatmul.f32.gmra.mxu0 %v2166
    %v2168 = vpop.f32.mrf.mxu0
    %v2169 = vadd.f32 %v2118, %v2168
    %v2170 = vand.u32 %v1938, 4294901760
    %2171 = vmatmul.f32.gmra.mxu0 %v2170
    %v2172 = vpop.f32.mrf.mxu0
    %v2173 = vadd.f32 %v2124, %v2172
    %2174 = vdwg.mxu0
    %2175 = vmatpush.msra.mxu0 0.0
    %2176 = vmatpush.msra.mxu0 0.0
    %2177 = vmatpush.msra.mxu0 0.0
    %2178 = vmatpush.msra.mxu0 0.0
    %2179 = vmatpush.msra.mxu0 0.0
    %2180 = vmatpush.msra.mxu0 0.0
    %2181 = vmatpush.msra.mxu0 0.0
    %2182 = vmatpush.msra.mxu0 0.0
    %v2183 = vand.u32 %v1931, 4294901760
    %2184 = vmatpush.msra.mxu0 %v2183
    %v2185 = vand.u32 %v1930, 4294901760
    %2186 = vmatpush.msra.mxu0 %v2185
    %v2187 = vand.u32 %v1929, 4294901760
    %2188 = vmatpush.msra.mxu0 %v2187
    %v2189 = vand.u32 %v1928, 4294901760
    %2190 = vmatpush.msra.mxu0 %v2189
    %v2191 = vand.u32 %v1927, 4294901760
    %2192 = vmatpush.msra.mxu0 %v2191
    %v2193 = vand.u32 %v1926, 4294901760
    %2194 = vmatpush.msra.mxu0 %v2193
    %v2195 = vand.u32 %v1925, 4294901760
    %2196 = vmatpush.msra.mxu0 %v2195
    %v2197 = vand.u32 %v1924, 4294901760
    %2198 = vmatpush.msra.mxu0 %v2197
    %v2199 = vand.u32 %v1935, 4294901760
    %2200 = vmatmul.f32.gmra.mxu0 %v2199
    %v2201 = vpop.f32.mrf.mxu0
    %v2202 = vadd.f32 %v2169, %v2201
    %v2203 = vand.u32 %v1938, 4294901760
    %2204 = vmatmul.f32.gmra.mxu0 %v2203
    %v2205 = vpop.f32.mrf.mxu0
    %v2206 = vadd.f32 %v2173, %v2205
    %2207 = vdwg.mxu0
    %vm2208 = vcmp.ge.f32.partialorder %v2202, 0.0
    %vm2209 = vcmp.ge.f32.partialorder %v2206, 0.0
    %v2210 = vmul.f32 %v2202, 0.2
    %v2211 = vmul.f32 %v2206, 0.2
    %v2212 = vsel %vm2208, %v2202, %v2210
    %v2213 = vsel %vm2209, %v2206, %v2211
    %v2214 = vld [vmem:[#allocation6 + $0x168] sm:$0xff]
    %v2215 = vld [vmem:[#allocation6 + $0x170] sm:$0xff]
    %v2216 = vld [vmem:[#allocation6 + $0x178] sm:$0xff]
    %v2217 = vld [vmem:[#allocation6 + $0x180] sm:$0xff]
    %v2218 = vld [vmem:[#allocation6 + $0x188] sm:$0xff]
    %v2219 = vld [vmem:[#allocation6 + $0x190] sm:$0xff]
    %v2220 = vld [vmem:[#allocation6 + $0x198] sm:$0xff]
    %v2221 = vld [vmem:[#allocation6 + $0x1a0] sm:$0xff]
    %v2222 = vld [vmem:[#allocation6 + $0x1a8] sm:$0x1]
    %v2223 = vperm.slane %v2222, 0
    %v2225 = vsel %vm54, %v2212, 0
    %v2228 = vsel %vm54, %v2213, 0
    %2230 = vmatpush.msra.mxu0 0.0
    %2231 = vmatpush.msra.mxu0 0.0
    %2232 = vmatpush.msra.mxu0 0.0
    %2233 = vmatpush.msra.mxu0 0.0
    %2234 = vmatpush.msra.mxu0 0.0
    %2235 = vmatpush.msra.mxu0 0.0
    %2236 = vmatpush.msra.mxu0 0.0
    %2237 = vmatpush.msra.mxu0 0.0
    %v2238 = vand.u32 %v2221, 4294901760
    %2239 = vmatpush.msra.mxu0 %v2238
    %v2240 = vand.u32 %v2220, 4294901760
    %2241 = vmatpush.msra.mxu0 %v2240
    %v2242 = vand.u32 %v2219, 4294901760
    %2243 = vmatpush.msra.mxu0 %v2242
    %v2244 = vand.u32 %v2218, 4294901760
    %2245 = vmatpush.msra.mxu0 %v2244
    %v2246 = vand.u32 %v2217, 4294901760
    %2247 = vmatpush.msra.mxu0 %v2246
    %v2248 = vand.u32 %v2216, 4294901760
    %2249 = vmatpush.msra.mxu0 %v2248
    %v2250 = vand.u32 %v2215, 4294901760
    %2251 = vmatpush.msra.mxu0 %v2250
    %v2252 = vand.u32 %v2214, 4294901760
    %2253 = vmatpush.msra.mxu0 %v2252
    %v2254 = vand.u32 %v2225, 4294901760
    %v2255 = vsub.f32 %v2225, %v2254
    %v2256 = vand.u32 %v2255, 4294901760
    %v2257 = vsub.f32 %v2255, %v2256
    %v2258 = vand.u32 %v2257, 4294901760
    %2259 = vmatmul.f32.gmra.mxu0 %v2258
    %v2260 = vpop.f32.mrf.mxu0
    %v2261 = vadd.f32 %v2223, %v2260
    %v2262 = vand.u32 %v2228, 4294901760
    %v2263 = vsub.f32 %v2228, %v2262
    %v2264 = vand.u32 %v2263, 4294901760
    %v2265 = vsub.f32 %v2263, %v2264
    %v2266 = vand.u32 %v2265, 4294901760
    %2267 = vmatmul.f32.gmra.mxu0 %v2266
    %v2268 = vpop.f32.mrf.mxu0
    %v2269 = vadd.f32 %v2223, %v2268
    %2270 = vdwg.mxu0
    %2271 = vmatpush.msra.mxu0 0.0
    %2272 = vmatpush.msra.mxu0 0.0
    %2273 = vmatpush.msra.mxu0 0.0
    %2274 = vmatpush.msra.mxu0 0.0
    %2275 = vmatpush.msra.mxu0 0.0
    %2276 = vmatpush.msra.mxu0 0.0
    %2277 = vmatpush.msra.mxu0 0.0
    %2278 = vmatpush.msra.mxu0 0.0
    %v2279 = vand.u32 %v2221, 4294901760
    %v2280 = vsub.f32 %v2221, %v2279
    %v2281 = vand.u32 %v2280, 4294901760
    %v2282 = vsub.f32 %v2280, %v2281
    %v2283 = vand.u32 %v2282, 4294901760
    %2284 = vmatpush.msra.mxu0 %v2283
    %v2285 = vand.u32 %v2220, 4294901760
    %v2286 = vsub.f32 %v2220, %v2285
    %v2287 = vand.u32 %v2286, 4294901760
    %v2288 = vsub.f32 %v2286, %v2287
    %v2289 = vand.u32 %v2288, 4294901760
    %2290 = vmatpush.msra.mxu0 %v2289
    %v2291 = vand.u32 %v2219, 4294901760
    %v2292 = vsub.f32 %v2219, %v2291
    %v2293 = vand.u32 %v2292, 4294901760
    %v2294 = vsub.f32 %v2292, %v2293
    %v2295 = vand.u32 %v2294, 4294901760
    %2296 = vmatpush.msra.mxu0 %v2295
    %v2297 = vand.u32 %v2218, 4294901760
    %v2298 = vsub.f32 %v2218, %v2297
    %v2299 = vand.u32 %v2298, 4294901760
    %v2300 = vsub.f32 %v2298, %v2299
    %v2301 = vand.u32 %v2300, 4294901760
    %2302 = vmatpush.msra.mxu0 %v2301
    %v2303 = vand.u32 %v2217, 4294901760
    %v2304 = vsub.f32 %v2217, %v2303
    %v2305 = vand.u32 %v2304, 4294901760
    %v2306 = vsub.f32 %v2304, %v2305
    %v2307 = vand.u32 %v2306, 4294901760
    %2308 = vmatpush.msra.mxu0 %v2307
    %v2309 = vand.u32 %v2216, 4294901760
    %v2310 = vsub.f32 %v2216, %v2309
    %v2311 = vand.u32 %v2310, 4294901760
    %v2312 = vsub.f32 %v2310, %v2311
    %v2313 = vand.u32 %v2312, 4294901760
    %2314 = vmatpush.msra.mxu0 %v2313
    %v2315 = vand.u32 %v2215, 4294901760
    %v2316 = vsub.f32 %v2215, %v2315
    %v2317 = vand.u32 %v2316, 4294901760
    %v2318 = vsub.f32 %v2316, %v2317
    %v2319 = vand.u32 %v2318, 4294901760
    %2320 = vmatpush.msra.mxu0 %v2319
    %v2321 = vand.u32 %v2214, 4294901760
    %v2322 = vsub.f32 %v2214, %v2321
    %v2323 = vand.u32 %v2322, 4294901760
    %v2324 = vsub.f32 %v2322, %v2323
    %v2325 = vand.u32 %v2324, 4294901760
    %2326 = vmatpush.msra.mxu0 %v2325
    %v2327 = vand.u32 %v2225, 4294901760
    %2328 = vmatmul.f32.gmra.mxu0 %v2327
    %v2329 = vpop.f32.mrf.mxu0
    %v2330 = vadd.f32 %v2261, %v2329
    %v2331 = vand.u32 %v2228, 4294901760
    %2332 = vmatmul.f32.gmra.mxu0 %v2331
    %v2333 = vpop.f32.mrf.mxu0
    %v2334 = vadd.f32 %v2269, %v2333
    %2335 = vdwg.mxu0
    %2336 = vmatpush.msra.mxu0 0.0
    %2337 = vmatpush.msra.mxu0 0.0
    %2338 = vmatpush.msra.mxu0 0.0
    %2339 = vmatpush.msra.mxu0 0.0
    %2340 = vmatpush.msra.mxu0 0.0
    %2341 = vmatpush.msra.mxu0 0.0
    %2342 = vmatpush.msra.mxu0 0.0
    %2343 = vmatpush.msra.mxu0 0.0
    %v2344 = vand.u32 %v2221, 4294901760
    %v2345 = vsub.f32 %v2221, %v2344
    %2346 = vmatpush.msra.mxu0 %v2345
    %v2347 = vand.u32 %v2220, 4294901760
    %v2348 = vsub.f32 %v2220, %v2347
    %2349 = vmatpush.msra.mxu0 %v2348
    %v2350 = vand.u32 %v2219, 4294901760
    %v2351 = vsub.f32 %v2219, %v2350
    %2352 = vmatpush.msra.mxu0 %v2351
    %v2353 = vand.u32 %v2218, 4294901760
    %v2354 = vsub.f32 %v2218, %v2353
    %2355 = vmatpush.msra.mxu0 %v2354
    %v2356 = vand.u32 %v2217, 4294901760
    %v2357 = vsub.f32 %v2217, %v2356
    %2358 = vmatpush.msra.mxu0 %v2357
    %v2359 = vand.u32 %v2216, 4294901760
    %v2360 = vsub.f32 %v2216, %v2359
    %2361 = vmatpush.msra.mxu0 %v2360
    %v2362 = vand.u32 %v2215, 4294901760
    %v2363 = vsub.f32 %v2215, %v2362
    %2364 = vmatpush.msra.mxu0 %v2363
    %v2365 = vand.u32 %v2214, 4294901760
    %v2366 = vsub.f32 %v2214, %v2365
    %2367 = vmatpush.msra.mxu0 %v2366
    %v2368 = vand.u32 %v2225, 4294901760
    %v2369 = vsub.f32 %v2225, %v2368
    %2370 = vmatmul.f32.gmra.mxu0 %v2369
    %v2371 = vpop.f32.mrf.mxu0
    %v2372 = vadd.f32 %v2330, %v2371
    %v2373 = vand.u32 %v2228, 4294901760
    %v2374 = vsub.f32 %v2228, %v2373
    %2375 = vmatmul.f32.gmra.mxu0 %v2374
    %v2376 = vpop.f32.mrf.mxu0
    %v2377 = vadd.f32 %v2334, %v2376
    %2378 = vdwg.mxu0
    %2379 = vmatpush.msra.mxu0 0.0
    %2380 = vmatpush.msra.mxu0 0.0
    %2381 = vmatpush.msra.mxu0 0.0
    %2382 = vmatpush.msra.mxu0 0.0
    %2383 = vmatpush.msra.mxu0 0.0
    %2384 = vmatpush.msra.mxu0 0.0
    %2385 = vmatpush.msra.mxu0 0.0
    %2386 = vmatpush.msra.mxu0 0.0
    %v2387 = vand.u32 %v2221, 4294901760
    %2388 = vmatpush.msra.mxu0 %v2387
    %v2389 = vand.u32 %v2220, 4294901760
    %2390 = vmatpush.msra.mxu0 %v2389
    %v2391 = vand.u32 %v2219, 4294901760
    %2392 = vmatpush.msra.mxu0 %v2391
    %v2393 = vand.u32 %v2218, 4294901760
    %2394 = vmatpush.msra.mxu0 %v2393
    %v2395 = vand.u32 %v2217, 4294901760
    %2396 = vmatpush.msra.mxu0 %v2395
    %v2397 = vand.u32 %v2216, 4294901760
    %2398 = vmatpush.msra.mxu0 %v2397
    %v2399 = vand.u32 %v2215, 4294901760
    %2400 = vmatpush.msra.mxu0 %v2399
    %v2401 = vand.u32 %v2214, 4294901760
    %2402 = vmatpush.msra.mxu0 %v2401
    %v2403 = vand.u32 %v2225, 4294901760
    %v2404 = vsub.f32 %v2225, %v2403
    %v2405 = vand.u32 %v2404, 4294901760
    %2406 = vmatmul.f32.gmra.mxu0 %v2405
    %v2407 = vpop.f32.mrf.mxu0
    %v2408 = vadd.f32 %v2372, %v2407
    %v2409 = vand.u32 %v2228, 4294901760
    %v2410 = vsub.f32 %v2228, %v2409
    %v2411 = vand.u32 %v2410, 4294901760
    %2412 = vmatmul.f32.gmra.mxu0 %v2411
    %v2413 = vpop.f32.mrf.mxu0
    %v2414 = vadd.f32 %v2377, %v2413
    %2415 = vdwg.mxu0
    %2416 = vmatpush.msra.mxu0 0.0
    %2417 = vmatpush.msra.mxu0 0.0
    %2418 = vmatpush.msra.mxu0 0.0
    %2419 = vmatpush.msra.mxu0 0.0
    %2420 = vmatpush.msra.mxu0 0.0
    %2421 = vmatpush.msra.mxu0 0.0
    %2422 = vmatpush.msra.mxu0 0.0
    %2423 = vmatpush.msra.mxu0 0.0
    %v2424 = vand.u32 %v2221, 4294901760
    %v2425 = vsub.f32 %v2221, %v2424
    %v2426 = vand.u32 %v2425, 4294901760
    %2427 = vmatpush.msra.mxu0 %v2426
    %v2428 = vand.u32 %v2220, 4294901760
    %v2429 = vsub.f32 %v2220, %v2428
    %v2430 = vand.u32 %v2429, 4294901760
    %2431 = vmatpush.msra.mxu0 %v2430
    %v2432 = vand.u32 %v2219, 4294901760
    %v2433 = vsub.f32 %v2219, %v2432
    %v2434 = vand.u32 %v2433, 4294901760
    %2435 = vmatpush.msra.mxu0 %v2434
    %v2436 = vand.u32 %v2218, 4294901760
    %v2437 = vsub.f32 %v2218, %v2436
    %v2438 = vand.u32 %v2437, 4294901760
    %2439 = vmatpush.msra.mxu0 %v2438
    %v2440 = vand.u32 %v2217, 4294901760
    %v2441 = vsub.f32 %v2217, %v2440
    %v2442 = vand.u32 %v2441, 4294901760
    %2443 = vmatpush.msra.mxu0 %v2442
    %v2444 = vand.u32 %v2216, 4294901760
    %v2445 = vsub.f32 %v2216, %v2444
    %v2446 = vand.u32 %v2445, 4294901760
    %2447 = vmatpush.msra.mxu0 %v2446
    %v2448 = vand.u32 %v2215, 4294901760
    %v2449 = vsub.f32 %v2215, %v2448
    %v2450 = vand.u32 %v2449, 4294901760
    %2451 = vmatpush.msra.mxu0 %v2450
    %v2452 = vand.u32 %v2214, 4294901760
    %v2453 = vsub.f32 %v2214, %v2452
    %v2454 = vand.u32 %v2453, 4294901760
    %2455 = vmatpush.msra.mxu0 %v2454
    %v2456 = vand.u32 %v2225, 4294901760
    %2457 = vmatmul.f32.gmra.mxu0 %v2456
    %v2458 = vpop.f32.mrf.mxu0
    %v2459 = vadd.f32 %v2408, %v2458
    %v2460 = vand.u32 %v2228, 4294901760
    %2461 = vmatmul.f32.gmra.mxu0 %v2460
    %v2462 = vpop.f32.mrf.mxu0
    %v2463 = vadd.f32 %v2414, %v2462
    %2464 = vdwg.mxu0
    %2465 = vmatpush.msra.mxu0 0.0
    %2466 = vmatpush.msra.mxu0 0.0
    %2467 = vmatpush.msra.mxu0 0.0
    %2468 = vmatpush.msra.mxu0 0.0
    %2469 = vmatpush.msra.mxu0 0.0
    %2470 = vmatpush.msra.mxu0 0.0
    %2471 = vmatpush.msra.mxu0 0.0
    %2472 = vmatpush.msra.mxu0 0.0
    %v2473 = vand.u32 %v2221, 4294901760
    %2474 = vmatpush.msra.mxu0 %v2473
    %v2475 = vand.u32 %v2220, 4294901760
    %2476 = vmatpush.msra.mxu0 %v2475
    %v2477 = vand.u32 %v2219, 4294901760
    %2478 = vmatpush.msra.mxu0 %v2477
    %v2479 = vand.u32 %v2218, 4294901760
    %2480 = vmatpush.msra.mxu0 %v2479
    %v2481 = vand.u32 %v2217, 4294901760
    %2482 = vmatpush.msra.mxu0 %v2481
    %v2483 = vand.u32 %v2216, 4294901760
    %2484 = vmatpush.msra.mxu0 %v2483
    %v2485 = vand.u32 %v2215, 4294901760
    %2486 = vmatpush.msra.mxu0 %v2485
    %v2487 = vand.u32 %v2214, 4294901760
    %2488 = vmatpush.msra.mxu0 %v2487
    %v2489 = vand.u32 %v2225, 4294901760
    %2490 = vmatmul.f32.gmra.mxu0 %v2489
    %v2491 = vpop.f32.mrf.mxu0
    %v2492 = vadd.f32 %v2459, %v2491
    %v2493 = vand.u32 %v2228, 4294901760
    %2494 = vmatmul.f32.gmra.mxu0 %v2493
    %v2495 = vpop.f32.mrf.mxu0
    %v2496 = vadd.f32 %v2463, %v2495
    %2497 = vdwg.mxu0
    %2498 = vst [vmem:[#allocation8] sm:$0xff] %v2492
    %2499 = vst [vmem:[#allocation8 + $0x8] sm:$0xff] %v2496
    // Predicated region
    $region18: #{tpu_custom_call.1} parent=1 // pred_check
      _
    $region19: #{tpu_custom_call.1} parent=1 // pred_check_branch
      %2501 = sbr.rel (0) target = $region21
    $region20: #{tpu_custom_call.1} parent=1 // pred_region
      %2503 = vsyncadd [#allocation5], 0
      %s2504 = sshll.u32 [#allocation8], 4
      %s2505 = int_to_ptr.vmem [resolvable:$true] %s2504
      %s2506 = sshll.u32 %s2, 4
      %s2507 = int_to_ptr.hbm [resolvable:$true] %s2506
      %2512 = dma.vmem_to_hbm [thread:$0]  %s2505, 256, %s2507, [#allocation5], 128, 128, 8
    $region21: #{tpu_custom_call.1} parent=1 // pred_fallthru
      _
    // Predicated region
    $region22: #{tpu_custom_call.1} parent=1 // pred_check
      _
    $region23: #{tpu_custom_call.1} parent=1 // pred_check_branch
      %2514 = sbr.rel (0) target = $region25
    $region24: #{tpu_custom_call.1} parent=1 // pred_region
      %2516 = dma.done [#allocation5], 256
    $region25: #{tpu_custom_call.1} parent=1 // pred_fallthru
      _
    %2517 = vsyncpa [#allocation4], 1
    %2518 = vsyncpa [#allocation7], 1
    %2519 = vsyncpa [#allocation5], 1

</llo_original>
